<compile_context>
chip_gen: v7x
topology: tpu7x:2x2x1
jax: 0.10.0
libtpu: 0.0.40
codegen_flags: <defaults>
</compile_context>

<pallas_src>
import jax
import jax.numpy as jnp
from jax.experimental import pallas as pl
from jax.experimental.pallas import tpu as pltpu

BN_EPS = 1e-5
NORM_EPS = 1e-8

SKIN_DIM = 256
MEL_DIM = 128
FEAT_DIM = SKIN_DIM + MEL_DIM   # 384
HIDDEN1 = 256
HIDDEN2 = 128
OUT_LANES = 128                 # lane-dense padded output width
LANE = 128


def _round_up(x, m):
    return (x + m - 1) // m * m


def _combined_kernel(
    x_ref,      # [TB, TK]       bf16  (flattened image K-tile)
    wf_ref,     # [TK, 384]      bf16  (fused skin|mel feature weight K-tile)
    bf_ref,     # [1, 384]       f32   (fused feature bias)
    w1a_ref,    # [256, 256]     f32   (BN-folded head layer 1, skin half)
    w1b_ref,    # [128, 256]     f32   (BN-folded head layer 1, mel half)
    b1_ref,     # [1, 256]       f32
    w2_ref,     # [256, 128]     f32   (BN-folded head layer 2)
    b2_ref,     # [1, 128]       f32
    w3_ref,     # [1, 128]       f32   (final Linear(128,1) as a row vector)
    b3_ref,     # [1, 1]         f32
    out_ref,    # [TB, 128]      f32   (logit broadcast lane-dense)
    acc_ref,    # [TB, 384]      f32 scratch (feature accumulator)
):
    k = pl.program_id(1)

    @pl.when(k == 0)
    def _():
        acc_ref[...] = jnp.zeros_like(acc_ref)

    # Fused feature matmul over the streamed K tile (bf16 MXU, f32 accumulate).
    acc_ref[...] += jnp.dot(x_ref[...], wf_ref[...],
                            preferred_element_type=jnp.float32)

    @pl.when(k == pl.num_programs(1) - 1)
    def _():
        feat = acc_ref[...] + bf_ref[...]
        skin = feat[:, :SKIN_DIM]
        mel = feat[:, SKIN_DIM:]

        # L2 normalize (eps added to the norm, as in torch) with the 0.8 / 1.2
        # concat scales folded into the per-row normalization factor.
        skin_norm = jnp.sqrt(jnp.sum(skin * skin, axis=1, keepdims=True))
        mel_norm = jnp.sqrt(jnp.sum(mel * mel, axis=1, keepdims=True))
        skin = skin * (0.8 / (skin_norm + NORM_EPS))
        mel = mel * (1.2 / (mel_norm + NORM_EPS))

        # Linear(384,256)+BN (folded) + ReLU, concat eliminated by split matmul.
        h1 = (jnp.dot(skin, w1a_ref[...], preferred_element_type=jnp.float32)
              + jnp.dot(mel, w1b_ref[...], preferred_element_type=jnp.float32)
              + b1_ref[...])
        h1 = jnp.maximum(h1, 0.0)

        # Linear(256,128)+BN (folded) + ReLU.
        h2 = jnp.dot(h1, w2_ref[...], preferred_element_type=jnp.float32) + b2_ref[...]
        h2 = jnp.maximum(h2, 0.0)

        # Linear(128,1) as a VPU multiply + cross-lane sum (skip N=1 MXU pass);
        # store broadcast lane-dense, wrapper slices column 0.
        logit = jnp.sum(h2 * w3_ref[...], axis=1, keepdims=True) + b3_ref[...]
        out_ref[...] = jnp.broadcast_to(logit, out_ref.shape).astype(out_ref.dtype)


def _fold_params(p):
    """Host-side (traced, outside the kernel) parameter folding."""
    # Fuse the two feature projections; stream them in bf16.
    w_feat = jnp.concatenate([p["w_skin"], p["w_mel"]], axis=1).astype(jnp.bfloat16)
    b_feat = jnp.concatenate([p["b_skin"], p["b_mel"]], axis=1).astype(jnp.float32)

    # Fold eval-mode BatchNorm1d into the preceding Linear layers (f32 math).
    s1 = p["g1"] * jax.lax.rsqrt(p["v1"] + BN_EPS)
    w1f = (p["w1"] * s1).astype(jnp.float32)
    b1f = ((p["b1"] - p["m1"]) * s1 + p["be1"]).astype(jnp.float32)
    s2 = p["g2"] * jax.lax.rsqrt(p["v2"] + BN_EPS)
    w2f = (p["w2"] * s2).astype(jnp.float32)
    b2f = ((p["b2"] - p["m2"]) * s2 + p["be2"]).astype(jnp.float32)

    w1a = w1f[:SKIN_DIM]           # [256, 256]
    w1b = w1f[SKIN_DIM:]           # [128, 256]
    w3row = p["w3"].reshape(1, HIDDEN2).astype(jnp.float32)
    b3 = p["b3"].astype(jnp.float32)
    return w_feat, b_feat, w1a, w1b, b1f, w2f, b2f, w3row, b3


@jax.jit
def combined_transfer_forward(x_nchw, params):
    B = x_nchw.shape[0]
    x_flat = x_nchw.reshape(B, -1).astype(jnp.float32)   # glue: NCHW -> [B, C*H*W]
    d_in = x_flat.shape[1]

    w_feat, b_feat, w1a, w1b, b1f, w2f, b2f, w3row, b3 = _fold_params(params)

    # ---- K (Din) tiling: stream the fused feature weight through VMEM ----
    din_pad = _round_up(d_in, LANE)
    tk = min(512, din_pad)
    din_pad = _round_up(din_pad, tk)

    # ---- batch padding / tiling: keep the MXU M dimension fed ----
    b_pad = _round_up(max(B, 16), 16)
    tb = min(128, b_pad)
    b_pad = _round_up(b_pad, tb)

    x_p = jnp.zeros((b_pad, din_pad), jnp.bfloat16)
    x_p = x_p.at[:B, :d_in].set(x_flat.astype(jnp.bfloat16))
    wf_p = jnp.zeros((din_pad, FEAT_DIM), jnp.bfloat16)
    wf_p = wf_p.at[:d_in, :].set(w_feat)

    grid = (b_pad // tb, din_pad // tk)

    out = pl.pallas_call(
        _combined_kernel,
        out_shape=jax.ShapeDtypeStruct((b_pad, OUT_LANES), jnp.float32),
        grid_spec=pltpu.PrefetchScalarGridSpec(
            num_scalar_prefetch=0,
            grid=grid,
            in_specs=[
                pl.BlockSpec((tb, tk), lambda b, k: (b, k)),            # x
                pl.BlockSpec((tk, FEAT_DIM), lambda b, k: (k, 0)),      # fused feature weight
                pl.BlockSpec((1, FEAT_DIM), lambda b, k: (0, 0)),       # fused feature bias
                pl.BlockSpec((SKIN_DIM, HIDDEN1), lambda b, k: (0, 0)),  # w1 (skin half)
                pl.BlockSpec((MEL_DIM, HIDDEN1), lambda b, k: (0, 0)),   # w1 (mel half)
                pl.BlockSpec((1, HIDDEN1), lambda b, k: (0, 0)),         # b1 (BN folded)
                pl.BlockSpec((HIDDEN1, HIDDEN2), lambda b, k: (0, 0)),   # w2 (BN folded)
                pl.BlockSpec((1, HIDDEN2), lambda b, k: (0, 0)),         # b2 (BN folded)
                pl.BlockSpec((1, HIDDEN2), lambda b, k: (0, 0)),         # w3 row
                pl.BlockSpec((1, 1), lambda b, k: (0, 0)),               # b3
            ],
            out_specs=pl.BlockSpec((tb, OUT_LANES), lambda b, k: (b, 0)),
            scratch_shapes=[pltpu.VMEM((tb, FEAT_DIM), jnp.float32)],
        ),
        compiler_params=pltpu.CompilerParams(
            dimension_semantics=("parallel", "arbitrary"),
            vmem_limit_bytes=32 * 1024 * 1024,
        ),
    )(x_p, wf_p, b_feat, w1a, w1b, b1f, w2f, b2f, w3row, b3)

    return out[:B, :1]


def make_params(key, d_in, skin_dim=SKIN_DIM, mel_dim=MEL_DIM,
                hidden1=HIDDEN1, hidden2=HIDDEN2, out_dim=1):
    ks = jax.random.split(key, 18)

    def lin(k, fan_in, fan_out):
        scale = 1.0 / jnp.sqrt(fan_in)
        return jax.random.uniform(k, (fan_in, fan_out), jnp.float32, -scale, scale)

    return {
        # feature-extractor stubs
        "w_skin": lin(ks[0], d_in, skin_dim),
        "b_skin": jax.random.normal(ks[1], (1, skin_dim), jnp.float32) * 0.01,
        "w_mel": lin(ks[2], d_in, mel_dim),
        "b_mel": jax.random.normal(ks[3], (1, mel_dim), jnp.float32) * 0.01,
        # combined_classifier
        "w1": lin(ks[4], skin_dim + mel_dim, hidden1),
        "b1": jax.random.normal(ks[5], (1, hidden1), jnp.float32) * 0.01,
        "g1": 1.0 + 0.1 * jax.random.normal(ks[6], (1, hidden1), jnp.float32),
        "be1": 0.1 * jax.random.normal(ks[7], (1, hidden1), jnp.float32),
        "m1": 0.05 * jax.random.normal(ks[8], (1, hidden1), jnp.float32),
        "v1": 1.0 + 0.1 * jax.random.uniform(ks[9], (1, hidden1), jnp.float32),
        "w2": lin(ks[10], hidden1, hidden2),
        "b2": jax.random.normal(ks[11], (1, hidden2), jnp.float32) * 0.01,
        "g2": 1.0 + 0.1 * jax.random.normal(ks[12], (1, hidden2), jnp.float32),
        "be2": 0.1 * jax.random.normal(ks[13], (1, hidden2), jnp.float32),
        "m2": 0.05 * jax.random.normal(ks[14], (1, hidden2), jnp.float32),
        "v2": 1.0 + 0.1 * jax.random.uniform(ks[15], (1, hidden2), jnp.float32),
        "w3": lin(ks[16], hidden2, out_dim),
        "b3": jnp.zeros((1, out_dim), jnp.float32),
    }


def reference_forward(x_nchw, p):
    """Pure-JAX reference of the module's forward (eval mode).

    Mirrors the kernel's bf16 streaming of the feature matmul (the only
    intentional precision difference); everything downstream is f32 in the
    original un-fused (BN-unfolded) form.
    """
    B = x_nchw.shape[0]
    x = x_nchw.reshape(B, -1).astype(jnp.float32)
    xb = x.astype(jnp.bfloat16)
    skin = jnp.dot(xb, p["w_skin"].astype(jnp.bfloat16),
                   preferred_element_type=jnp.float32) + p["b_skin"]
    mel = jnp.dot(xb, p["w_mel"].astype(jnp.bfloat16),
                  preferred_element_type=jnp.float32) + p["b_mel"]
    skin = skin / (jnp.linalg.norm(skin, axis=1, keepdims=True) + NORM_EPS)
    mel = mel / (jnp.linalg.norm(mel, axis=1, keepdims=True) + NORM_EPS)
    c = jnp.concatenate([skin * 0.8, mel * 1.2], axis=1)
    h1 = c @ p["w1"] + p["b1"]
    h1 = p["g1"] * (h1 - p["m1"]) / jnp.sqrt(p["v1"] + BN_EPS) + p["be1"]
    h1 = jnp.maximum(h1, 0.0)
    h2 = h1 @ p["w2"] + p["b2"]
    h2 = p["g2"] * (h2 - p["m2"]) / jnp.sqrt(p["v2"] + BN_EPS) + p["be2"]
    h2 = jnp.maximum(h2, 0.0)
    return h2 @ p["w3"] + p["b3"]


if __name__ == "__main__":
    key = jax.random.PRNGKey(0)
    k_x, k_p = jax.random.split(key)

    B, C, H, W = 2, 4, 16, 16
    x = jax.random.normal(k_x, (B, C, H, W), jnp.float32)
    params = make_params(k_p, d_in=C * H * W)

    out = combined_transfer_forward(x, params)
    out = jax.block_until_ready(out)

    ref = reference_forward(x, params)
    assert out.shape == (B, 1), out.shape
    assert jnp.allclose(out, ref, atol=2e-3, rtol=2e-3), (out, ref)

    print("KERNEL_OK")
</pallas_src>

<mosaic_0001>
module attributes {stable_mosaic.version = 11 : i64} {
  func.func @_combined_kernel(%arg0: i32, %arg1: i32, %arg2: memref<16x512xbf16, #tpu.memory_space<vmem>>, %arg3: memref<512x384xbf16, #tpu.memory_space<vmem>>, %arg4: memref<1x384xf32, #tpu.memory_space<vmem>>, %arg5: memref<256x256xf32, #tpu.memory_space<vmem>>, %arg6: memref<128x256xf32, #tpu.memory_space<vmem>>, %arg7: memref<1x256xf32, #tpu.memory_space<vmem>>, %arg8: memref<256x128xf32, #tpu.memory_space<vmem>>, %arg9: memref<1x128xf32, #tpu.memory_space<vmem>>, %arg10: memref<1x128xf32, #tpu.memory_space<vmem>>, %arg11: memref<1x1xf32, #tpu.memory_space<vmem>>, %arg12: memref<16x128xf32, #tpu.memory_space<vmem>>, %arg13: memref<16x384xf32, #tpu.memory_space<vmem>>) attributes {dimension_semantics = [#tpu.dimension_semantics<parallel>, #tpu.dimension_semantics<arbitrary>], iteration_bounds = array<i64: 1, 2>, scalar_prefetch = 0 : i64, scratch_operands = 1 : i64, tpu.core_type = #tpu.core_type<tc>, window_params = [{transform_indices = @transform_0, window_bounds = array<i64: 16, 512>}, {transform_indices = @transform_1, window_bounds = array<i64: 512, 384>}, {pipeline_mode = #tpu.pipeline_mode<synchronous>, transform_indices = @transform_2, window_bounds = array<i64: 1, 384>}, {pipeline_mode = #tpu.pipeline_mode<synchronous>, transform_indices = @transform_3, window_bounds = array<i64: 256, 256>}, {pipeline_mode = #tpu.pipeline_mode<synchronous>, transform_indices = @transform_4, window_bounds = array<i64: 128, 256>}, {pipeline_mode = #tpu.pipeline_mode<synchronous>, transform_indices = @transform_5, window_bounds = array<i64: 1, 256>}, {pipeline_mode = #tpu.pipeline_mode<synchronous>, transform_indices = @transform_6, window_bounds = array<i64: 256, 128>}, {pipeline_mode = #tpu.pipeline_mode<synchronous>, transform_indices = @transform_7, window_bounds = array<i64: 1, 128>}, {pipeline_mode = #tpu.pipeline_mode<synchronous>, transform_indices = @transform_8, window_bounds = array<i64: 1, 128>}, {pipeline_mode = #tpu.pipeline_mode<synchronous>, transform_indices = @transform_9, window_bounds = array<i64: 1, 1>}, {transform_indices = @transform_10, window_bounds = array<i64: 16, 128>}]} {
    %c0_i32 = arith.constant 0 : i32
    %0 = arith.cmpi eq, %arg1, %c0_i32 : i32
    %1 = arith.extui %0 : i1 to i32
    %c0_i32_0 = arith.constant 0 : i32
    %2 = arith.cmpi ne, %1, %c0_i32_0 : i32
    scf.if %2 {
      %cst_9 = arith.constant 0.000000e+00 : f32
      %12 = vector.broadcast %cst_9 : f32 to vector<16x384xf32>
      %c0_10 = arith.constant 0 : index
      %c0_11 = arith.constant 0 : index
      %13 = vector.load %arg13[%c0_10, %c0_11] : memref<16x384xf32, #tpu.memory_space<vmem>>, vector<16x384xf32>
      tpu.vector_store %arg13[%c0_10, %c0_11], %12 {strides = array<i32>} : memref<16x384xf32, #tpu.memory_space<vmem>>, vector<16x384xf32>,
    } else {
    }
    %c0 = arith.constant 0 : index
    %c0_1 = arith.constant 0 : index
    %3 = vector.load %arg13[%c0, %c0_1] : memref<16x384xf32, #tpu.memory_space<vmem>>, vector<16x384xf32>
    %c0_2 = arith.constant 0 : index
    %c0_3 = arith.constant 0 : index
    %4 = vector.load %arg2[%c0_2, %c0_3] : memref<16x512xbf16, #tpu.memory_space<vmem>>, vector<16x512xbf16>
    %c0_4 = arith.constant 0 : index
    %c0_5 = arith.constant 0 : index
    %5 = vector.load %arg3[%c0_4, %c0_5] : memref<512x384xbf16, #tpu.memory_space<vmem>>, vector<512x384xbf16>
    %cst = arith.constant dense<0.000000e+00> : vector<16x384xf32>
    %6 = tpu.matmul %4, %5, %cst {dimension_numbers = #tpu.dot_dimension_numbers<[1], [0], [0], [1], [0, 0, 1, 1], [], []>} : vector<16x512xbf16>, vector<512x384xbf16>, vector<16x384xf32> -> vector<16x384xf32>
    %7 = arith.addf %3, %6 : vector<16x384xf32>
    %c0_6 = arith.constant 0 : index
    %c0_7 = arith.constant 0 : index
    %8 = vector.load %arg13[%c0_6, %c0_7] : memref<16x384xf32, #tpu.memory_space<vmem>>, vector<16x384xf32>
    tpu.vector_store %arg13[%c0_6, %c0_7], %7 {strides = array<i32>} : memref<16x384xf32, #tpu.memory_space<vmem>>, vector<16x384xf32>,
    %c1_i32 = arith.constant 1 : i32
    %9 = arith.cmpi eq, %arg1, %c1_i32 : i32
    %10 = arith.extui %9 : i1 to i32
    %c0_i32_8 = arith.constant 0 : i32
    %11 = arith.cmpi ne, %10, %c0_i32_8 : i32
    scf.if %11 {
      %c0_9 = arith.constant 0 : index
      %c0_10 = arith.constant 0 : index
      %12 = vector.load %arg13[%c0_9, %c0_10] : memref<16x384xf32, #tpu.memory_space<vmem>>, vector<16x384xf32>
      %c0_11 = arith.constant 0 : index
      %c0_12 = arith.constant 0 : index
      %13 = vector.load %arg4[%c0_11, %c0_12] : memref<1x384xf32, #tpu.memory_space<vmem>>, vector<1x384xf32>
      %14 = vector.broadcast %13 : vector<1x384xf32> to vector<16x384xf32>
      %15 = arith.addf %12, %14 : vector<16x384xf32>
      %16 = vector.extract_strided_slice %15 {offsets = [0, 0], sizes = [16, 256], strides = [1, 1]} : vector<16x384xf32> to vector<16x256xf32>
      %17 = vector.extract_strided_slice %15 {offsets = [0, 256], sizes = [16, 128], strides = [1, 1]} : vector<16x384xf32> to vector<16x128xf32>
      %18 = arith.mulf %16, %16 : vector<16x256xf32>
      %cst_13 = arith.constant dense<0.000000e+00> : vector<16xf32>
      %19 = vector.multi_reduction <add>, %18, %cst_13 [1] : vector<16x256xf32> to vector<16xf32>
      %20 = vector.shape_cast %19 : vector<16xf32> to vector<16x1xf32>
      %21 = math.sqrt %20 : vector<16x1xf32>
      %22 = arith.mulf %17, %17 : vector<16x128xf32>
      %cst_14 = arith.constant dense<0.000000e+00> : vector<16xf32>
      %23 = vector.multi_reduction <add>, %22, %cst_14 [1] : vector<16x128xf32> to vector<16xf32>
      %24 = vector.shape_cast %23 : vector<16xf32> to vector<16x1xf32>
      %25 = math.sqrt %24 : vector<16x1xf32>
      %cst_15 = arith.constant 9.99999993E-9 : f32
      %26 = vector.broadcast %cst_15 : f32 to vector<16x1xf32>
      %27 = arith.addf %21, %26 : vector<16x1xf32>
      %cst_16 = arith.constant 8.000000e-01 : f32
      %28 = vector.broadcast %cst_16 : f32 to vector<16x1xf32>
      %29 = arith.divf %28, %27 : vector<16x1xf32>
      %30 = vector.broadcast %29 : vector<16x1xf32> to vector<16x256xf32>
      %31 = arith.mulf %16, %30 : vector<16x256xf32>
      %cst_17 = arith.constant 9.99999993E-9 : f32
      %32 = vector.broadcast %cst_17 : f32 to vector<16x1xf32>
      %33 = arith.addf %25, %32 : vector<16x1xf32>
      %cst_18 = arith.constant 1.200000e+00 : f32
      %34 = vector.broadcast %cst_18 : f32 to vector<16x1xf32>
      %35 = arith.divf %34, %33 : vector<16x1xf32>
      %36 = vector.broadcast %35 : vector<16x1xf32> to vector<16x128xf32>
      %37 = arith.mulf %17, %36 : vector<16x128xf32>
      %c0_19 = arith.constant 0 : index
      %c0_20 = arith.constant 0 : index
      %38 = vector.load %arg5[%c0_19, %c0_20] : memref<256x256xf32, #tpu.memory_space<vmem>>, vector<256x256xf32>
      %cst_21 = arith.constant dense<0.000000e+00> : vector<16x256xf32>
      %39 = tpu.matmul %31, %38, %cst_21 {dimension_numbers = #tpu.dot_dimension_numbers<[1], [0], [0], [1], [0, 0, 1, 1], [], []>} : vector<16x256xf32>, vector<256x256xf32>, vector<16x256xf32> -> vector<16x256xf32>
      %c0_22 = arith.constant 0 : index
      %c0_23 = arith.constant 0 : index
      %40 = vector.load %arg6[%c0_22, %c0_23] : memref<128x256xf32, #tpu.memory_space<vmem>>, vector<128x256xf32>
      %cst_24 = arith.constant dense<0.000000e+00> : vector<16x256xf32>
      %41 = tpu.matmul %37, %40, %cst_24 {dimension_numbers = #tpu.dot_dimension_numbers<[1], [0], [0], [1], [0, 0, 1, 1], [], []>} : vector<16x128xf32>, vector<128x256xf32>, vector<16x256xf32> -> vector<16x256xf32>
      %42 = arith.addf %39, %41 : vector<16x256xf32>
      %c0_25 = arith.constant 0 : index
      %c0_26 = arith.constant 0 : index
      %43 = vector.load %arg7[%c0_25, %c0_26] : memref<1x256xf32, #tpu.memory_space<vmem>>, vector<1x256xf32>
      %44 = vector.broadcast %43 : vector<1x256xf32> to vector<16x256xf32>
      %45 = arith.addf %42, %44 : vector<16x256xf32>
      %cst_27 = arith.constant 0.000000e+00 : f32
      %46 = vector.broadcast %cst_27 : f32 to vector<16x256xf32>
      %47 = arith.maximumf %45, %46 : vector<16x256xf32>
      %c0_28 = arith.constant 0 : index
      %c0_29 = arith.constant 0 : index
      %48 = vector.load %arg8[%c0_28, %c0_29] : memref<256x128xf32, #tpu.memory_space<vmem>>, vector<256x128xf32>
      %cst_30 = arith.constant dense<0.000000e+00> : vector<16x128xf32>
      %49 = tpu.matmul %47, %48, %cst_30 {dimension_numbers = #tpu.dot_dimension_numbers<[1], [0], [0], [1], [0, 0, 1, 1], [], []>} : vector<16x256xf32>, vector<256x128xf32>, vector<16x128xf32> -> vector<16x128xf32>
      %c0_31 = arith.constant 0 : index
      %c0_32 = arith.constant 0 : index
      %50 = vector.load %arg9[%c0_31, %c0_32] : memref<1x128xf32, #tpu.memory_space<vmem>>, vector<1x128xf32>
      %51 = vector.broadcast %50 : vector<1x128xf32> to vector<16x128xf32>
      %52 = arith.addf %49, %51 : vector<16x128xf32>
      %cst_33 = arith.constant 0.000000e+00 : f32
      %53 = vector.broadcast %cst_33 : f32 to vector<16x128xf32>
      %54 = arith.maximumf %52, %53 : vector<16x128xf32>
      %c0_34 = arith.constant 0 : index
      %c0_35 = arith.constant 0 : index
      %55 = vector.load %arg10[%c0_34, %c0_35] : memref<1x128xf32, #tpu.memory_space<vmem>>, vector<1x128xf32>
      %56 = vector.broadcast %55 : vector<1x128xf32> to vector<16x128xf32>
      %57 = arith.mulf %54, %56 : vector<16x128xf32>
      %cst_36 = arith.constant dense<0.000000e+00> : vector<16xf32>
      %58 = vector.multi_reduction <add>, %57, %cst_36 [1] : vector<16x128xf32> to vector<16xf32>
      %59 = vector.shape_cast %58 : vector<16xf32> to vector<16x1xf32>
      %c0_37 = arith.constant 0 : index
      %c0_38 = arith.constant 0 : index
      %60 = vector.load %arg11[%c0_37, %c0_38] : memref<1x1xf32, #tpu.memory_space<vmem>>, vector<1x1xf32>
      %61 = vector.broadcast %60 : vector<1x1xf32> to vector<16x1xf32>
      %62 = arith.addf %59, %61 : vector<16x1xf32>
      %63 = vector.shape_cast %62 : vector<16x1xf32> to vector<16x1xf32>
      %64 = vector.broadcast %63 : vector<16x1xf32> to vector<16x128xf32>
      %c0_39 = arith.constant 0 : index
      %c0_40 = arith.constant 0 : index
      %65 = vector.load %arg12[%c0_39, %c0_40] : memref<16x128xf32, #tpu.memory_space<vmem>>, vector<16x128xf32>
      tpu.vector_store %arg12[%c0_39, %c0_40], %64 {strides = array<i32>} : memref<16x128xf32, #tpu.memory_space<vmem>>, vector<16x128xf32>,
    } else {
    }
    return
  }
  func.func @transform_0(%arg0: i32, %arg1: i32) -> (i32, i32) {
    %c0_i32 = arith.constant 0 : i32
    return %arg0, %arg1 : i32, i32
  }
  func.func @transform_1(%arg0: i32, %arg1: i32) -> (i32, i32) {
    %c0_i32 = arith.constant 0 : i32
    %c0_i32_0 = arith.constant 0 : i32
    return %arg1, %c0_i32 : i32, i32
  }
  func.func @transform_2(%arg0: i32, %arg1: i32) -> (i32, i32) {
    %c0_i32 = arith.constant 0 : i32
    %c0_i32_0 = arith.constant 0 : i32
    %c0_i32_1 = arith.constant 0 : i32
    return %c0_i32, %c0_i32_0 : i32, i32
  }
  func.func @transform_3(%arg0: i32, %arg1: i32) -> (i32, i32) {
    %c0_i32 = arith.constant 0 : i32
    %c0_i32_0 = arith.constant 0 : i32
    %c0_i32_1 = arith.constant 0 : i32
    return %c0_i32, %c0_i32_0 : i32, i32
  }
  func.func @transform_4(%arg0: i32, %arg1: i32) -> (i32, i32) {
    %c0_i32 = arith.constant 0 : i32
    %c0_i32_0 = arith.constant 0 : i32
    %c0_i32_1 = arith.constant 0 : i32
    return %c0_i32, %c0_i32_0 : i32, i32
  }
  func.func @transform_5(%arg0: i32, %arg1: i32) -> (i32, i32) {
    %c0_i32 = arith.constant 0 : i32
    %c0_i32_0 = arith.constant 0 : i32
    %c0_i32_1 = arith.constant 0 : i32
    return %c0_i32, %c0_i32_0 : i32, i32
  }
  func.func @transform_6(%arg0: i32, %arg1: i32) -> (i32, i32) {
    %c0_i32 = arith.constant 0 : i32
    %c0_i32_0 = arith.constant 0 : i32
    %c0_i32_1 = arith.constant 0 : i32
    return %c0_i32, %c0_i32_0 : i32, i32
  }
  func.func @transform_7(%arg0: i32, %arg1: i32) -> (i32, i32) {
    %c0_i32 = arith.constant 0 : i32
    %c0_i32_0 = arith.constant 0 : i32
    %c0_i32_1 = arith.constant 0 : i32
    return %c0_i32, %c0_i32_0 : i32, i32
  }
  func.func @transform_8(%arg0: i32, %arg1: i32) -> (i32, i32) {
    %c0_i32 = arith.constant 0 : i32
    %c0_i32_0 = arith.constant 0 : i32
    %c0_i32_1 = arith.constant 0 : i32
    return %c0_i32, %c0_i32_0 : i32, i32
  }
  func.func @transform_9(%arg0: i32, %arg1: i32) -> (i32, i32) {
    %c0_i32 = arith.constant 0 : i32
    %c0_i32_0 = arith.constant 0 : i32
    %c0_i32_1 = arith.constant 0 : i32
    return %c0_i32, %c0_i32_0 : i32, i32
  }
  func.func @transform_10(%arg0: i32, %arg1: i32) -> (i32, i32) {
    %c0_i32 = arith.constant 0 : i32
    %c0_i32_0 = arith.constant 0 : i32
    return %arg0, %c0_i32 : i32, i32
  }
}

</mosaic_0001>

<llo_original>
// kernel: combined_transfer_forward.1
$region0: #{combined_transfer_forward.1}
  #allocation0 [shape = 'u32[]', space=smem, size = 0x4, offset = 0x4, fixed_abs, tag = 'smem constant byte address 0x4 - core index']
  #allocation1 [shape = 'u32[144,128]{1,0:T(1,128)}', space=vmem, size = 0x12000, scoped, tag = 'internal scratch']
  #allocation2 [shape = 'f32[16,384]{1,0:T(8,128)}', space=vmem, size = 0x6000, scoped, tag = 'scratch operand']
  #allocation3 [shape = 'f32[1,1]{1,0:T(1,128)S(1)}', space=vmem, size = 0x200, scoped, tag = 'scoped memory for combined_transfer_forward.1']
  %s0 = inlined_call_operand.vmem [shape: bf16[16,1024], index: 0, kind: input, shape index: {}]
  %s1 = inlined_call_operand.vmem [shape: bf16[1024,384], index: 1, kind: input, shape index: {}]
  %s2 = inlined_call_operand.vmem [shape: f32[1,384], index: 2, kind: input, shape index: {}]
  %s3 = inlined_call_operand.vmem [shape: f32[256,256], index: 3, kind: input, shape index: {}]
  %s4 = inlined_call_operand.vmem [shape: f32[128,256], index: 4, kind: input, shape index: {}]
  %s5 = inlined_call_operand.vmem [shape: f32[1,256], index: 5, kind: input, shape index: {}]
  %s6 = inlined_call_operand.vmem [shape: f32[256,128], index: 6, kind: input, shape index: {}]
  %s7 = inlined_call_operand.vmem [shape: f32[1,128], index: 7, kind: input, shape index: {}]
  %s8 = inlined_call_operand.vmem [shape: f32[1,128], index: 8, kind: input, shape index: {}]
  %s9 = inlined_call_operand.<no memory space> [shape: f32[1,1], index: 9, kind: input, shape index: {}]
  %s10 = inlined_call_operand.vmem [shape: f32[16,128], index: 10, kind: output, shape index: {}]
  %s11 = sld [smem:[#allocation0]]
  $region104: #{combined_transfer_forward.1} parent=0
    _
  %s13 = ssub.s32 1, %s11
  %s14 = scalar_select 0, %s13, %s11
  %v15 = vstv %s9
  %16 = vst [vmem:[#allocation3] sm:$0x1] %v15
  $region1: #{combined_transfer_forward.1} parent=0
    #allocation4 [shape = 'u8[32768]{0}', space=vmem, size = 0x8000, scoped, tag = 'input window, operand 0']
    loop: start=0, step=1, limit=4
    $region2: #{combined_transfer_forward.1} parent=1 // loop_pre_header
      _
    $region3: #{combined_transfer_forward.1} parent=1 // loop_header
      %s18 = sphi 0, %s22
      %p19 = scmp.ge.s32.totalorder %s18, 4
      %s25 = sphi 0, %s37
      %s26 = sphi 0, %s33
      %s27 = sphi 0, %s25
      %s28 = sphi 0, %s26
      %s29 = sphi 0, %s27
      %s30 = sphi 0, %s28
      %s42 = sphi 0, %s44
      %s45 = sphi 0, %s42
      %s46 = sphi 0, %s45
      %s62 = sphi 0, %s46
      %s68 = sphi 0, %s70
      %s71 = sphi 0, %s68
      %s72 = sphi 0, %s71
      %s88 = sphi 0, %s72
      %s92 = sphi 0, %s92
      %s94 = sphi 0, %s92
      %s95 = sphi 0, %s94
      %s109 = sphi 0, %s95
      %s113 = sphi 0, %s113
      %s115 = sphi 0, %s113
      %s116 = sphi 0, %s115
      %s130 = sphi 0, %s116
      %s134 = sphi 0, %s134
      %s136 = sphi 0, %s134
      %s137 = sphi 0, %s136
      %s151 = sphi 0, %s137
      %s155 = sphi 0, %s155
      %s157 = sphi 0, %s155
      %s158 = sphi 0, %s157
      %s172 = sphi 0, %s158
      %s176 = sphi 0, %s176
      %s178 = sphi 0, %s176
      %s179 = sphi 0, %s178
      %s193 = sphi 0, %s179
      %s197 = sphi 0, %s197
      %s199 = sphi 0, %s197
      %s200 = sphi 0, %s199
      %s214 = sphi 0, %s200
      %s218 = sphi 0, %s218
      %s220 = sphi 0, %s218
      %s221 = sphi 0, %s220
      %s235 = sphi 0, %s221
      %s239 = sphi 0, %s239
      %s241 = sphi 0, %s239
      %s242 = sphi 0, %s241
      %s256 = sphi 0, %s242
      %s262 = sphi 0, %s264
      %s265 = sphi 0, %s262
      %s266 = sphi 0, %s265
      %s282 = sphi 0, %s266
    $region4: #{combined_transfer_forward.1} parent=1 // loop_header_branch
      %21 = sbr.rel (%p19) target = $region8
    $region5: #{combined_transfer_forward.1} parent=1 // loop_body
      %s23 = ssub.s32 %s18, 1
      %s24 = ssub.s32 %s18, 2
      %s31 = sadd.s32 1, %s26
      %p32 = scmp.ge.s32.totalorder %s31, 2
      %s33 = scalar_select %p32, 0, %s31
      %s34 = sadd.s32 1, %s25
      %s35 = scalar_select %p32, %s34, %s25
      %p36 = scmp.ge.s32.totalorder %s35, 1
      %s37 = scalar_select %p36, 0, %s35
      %s38 = ssub.s32 %s25, %s37
      %s39 = ssub.s32 %s26, %s33
      %s40 = sor.u32 %s38, %s39
      %p41 = scmp.eq.s32.totalorder %s40, 0
      %s43 = sadd.s32 %s42, 1
      %s44 = scalar_select %p41, %s42, %s43
      %p47 = pneg %p41
      %p48 = scmp.eq.s32.totalorder %s18, 1
      %p49 = por %p47, %p48
      %p50 = scmp.ne.s32.totalorder %s42, %s45
      %p51 = scmp.eq.s32.totalorder %s18, 0
      %p52 = por %p50, %p51
      %p53 = scmp.ne.s32.totalorder %s42, %s45
      %p54 = scmp.eq.s32.totalorder %s23, 1
      %p55 = por %p53, %p54
      %p56 = scmp.ne.s32.totalorder %s45, %s46
      %p57 = scmp.eq.s32.totalorder %s23, 0
      %p58 = por %p56, %p57
      %p59 = scmp.ne.s32.totalorder %s45, %s46
      %p60 = scmp.eq.s32.totalorder %s24, 1
      %p61 = por %p59, %p60
      %p63 = scmp.ne.s32.totalorder %s46, %s62
      %p64 = scmp.eq.s32.totalorder %s24, 0
      %p65 = por %p63, %p64
      %s66 = ssub.s32 %s26, %s33
      %p67 = scmp.eq.s32.totalorder %s66, 0
      %s69 = sadd.s32 %s68, 1
      %s70 = scalar_select %p67, %s68, %s69
      %p73 = pneg %p67
      %p74 = scmp.eq.s32.totalorder %s18, 1
      %p75 = por %p73, %p74
      %p76 = scmp.ne.s32.totalorder %s68, %s71
      %p77 = scmp.eq.s32.totalorder %s18, 0
      %p78 = por %p76, %p77
      %p79 = scmp.ne.s32.totalorder %s68, %s71
      %p80 = scmp.eq.s32.totalorder %s23, 1
      %p81 = por %p79, %p80
      %p82 = scmp.ne.s32.totalorder %s71, %s72
      %p83 = scmp.eq.s32.totalorder %s23, 0
      %p84 = por %p82, %p83
      %p85 = scmp.ne.s32.totalorder %s71, %s72
      %p86 = scmp.eq.s32.totalorder %s24, 1
      %p87 = por %p85, %p86
      %p89 = scmp.ne.s32.totalorder %s72, %s88
      %p90 = scmp.eq.s32.totalorder %s24, 0
      %p91 = por %p89, %p90
      %s93 = sadd.s32 %s92, 1
      %p96 = scmp.eq.s32.totalorder %s18, 1
      %p97 = scmp.ne.s32.totalorder %s92, %s94
      %p98 = scmp.eq.s32.totalorder %s18, 0
      %p99 = por %p97, %p98
      %p100 = scmp.ne.s32.totalorder %s92, %s94
      %p101 = scmp.eq.s32.totalorder %s23, 1
      %p102 = por %p100, %p101
      %p103 = scmp.ne.s32.totalorder %s94, %s95
      %p104 = scmp.eq.s32.totalorder %s23, 0
      %p105 = por %p103, %p104
      %p106 = scmp.ne.s32.totalorder %s94, %s95
      %p107 = scmp.eq.s32.totalorder %s24, 1
      %p108 = por %p106, %p107
      %p110 = scmp.ne.s32.totalorder %s95, %s109
      %p111 = scmp.eq.s32.totalorder %s24, 0
      %p112 = por %p110, %p111
      %s114 = sadd.s32 %s113, 1
      %p117 = scmp.eq.s32.totalorder %s18, 1
      %p118 = scmp.ne.s32.totalorder %s113, %s115
      %p119 = scmp.eq.s32.totalorder %s18, 0
      %p120 = por %p118, %p119
      %p121 = scmp.ne.s32.totalorder %s113, %s115
      %p122 = scmp.eq.s32.totalorder %s23, 1
      %p123 = por %p121, %p122
      %p124 = scmp.ne.s32.totalorder %s115, %s116
      %p125 = scmp.eq.s32.totalorder %s23, 0
      %p126 = por %p124, %p125
      %p127 = scmp.ne.s32.totalorder %s115, %s116
      %p128 = scmp.eq.s32.totalorder %s24, 1
      %p129 = por %p127, %p128
      %p131 = scmp.ne.s32.totalorder %s116, %s130
      %p132 = scmp.eq.s32.totalorder %s24, 0
      %p133 = por %p131, %p132
      %s135 = sadd.s32 %s134, 1
      %p138 = scmp.eq.s32.totalorder %s18, 1
      %p139 = scmp.ne.s32.totalorder %s134, %s136
      %p140 = scmp.eq.s32.totalorder %s18, 0
      %p141 = por %p139, %p140
      %p142 = scmp.ne.s32.totalorder %s134, %s136
      %p143 = scmp.eq.s32.totalorder %s23, 1
      %p144 = por %p142, %p143
      %p145 = scmp.ne.s32.totalorder %s136, %s137
      %p146 = scmp.eq.s32.totalorder %s23, 0
      %p147 = por %p145, %p146
      %p148 = scmp.ne.s32.totalorder %s136, %s137
      %p149 = scmp.eq.s32.totalorder %s24, 1
      %p150 = por %p148, %p149
      %p152 = scmp.ne.s32.totalorder %s137, %s151
      %p153 = scmp.eq.s32.totalorder %s24, 0
      %p154 = por %p152, %p153
      %s156 = sadd.s32 %s155, 1
      %p159 = scmp.eq.s32.totalorder %s18, 1
      %p160 = scmp.ne.s32.totalorder %s155, %s157
      %p161 = scmp.eq.s32.totalorder %s18, 0
      %p162 = por %p160, %p161
      %p163 = scmp.ne.s32.totalorder %s155, %s157
      %p164 = scmp.eq.s32.totalorder %s23, 1
      %p165 = por %p163, %p164
      %p166 = scmp.ne.s32.totalorder %s157, %s158
      %p167 = scmp.eq.s32.totalorder %s23, 0
      %p168 = por %p166, %p167
      %p169 = scmp.ne.s32.totalorder %s157, %s158
      %p170 = scmp.eq.s32.totalorder %s24, 1
      %p171 = por %p169, %p170
      %p173 = scmp.ne.s32.totalorder %s158, %s172
      %p174 = scmp.eq.s32.totalorder %s24, 0
      %p175 = por %p173, %p174
      %s177 = sadd.s32 %s176, 1
      %p180 = scmp.eq.s32.totalorder %s18, 1
      %p181 = scmp.ne.s32.totalorder %s176, %s178
      %p182 = scmp.eq.s32.totalorder %s18, 0
      %p183 = por %p181, %p182
      %p184 = scmp.ne.s32.totalorder %s176, %s178
      %p185 = scmp.eq.s32.totalorder %s23, 1
      %p186 = por %p184, %p185
      %p187 = scmp.ne.s32.totalorder %s178, %s179
      %p188 = scmp.eq.s32.totalorder %s23, 0
      %p189 = por %p187, %p188
      %p190 = scmp.ne.s32.totalorder %s178, %s179
      %p191 = scmp.eq.s32.totalorder %s24, 1
      %p192 = por %p190, %p191
      %p194 = scmp.ne.s32.totalorder %s179, %s193
      %p195 = scmp.eq.s32.totalorder %s24, 0
      %p196 = por %p194, %p195
      %s198 = sadd.s32 %s197, 1
      %p201 = scmp.eq.s32.totalorder %s18, 1
      %p202 = scmp.ne.s32.totalorder %s197, %s199
      %p203 = scmp.eq.s32.totalorder %s18, 0
      %p204 = por %p202, %p203
      %p205 = scmp.ne.s32.totalorder %s197, %s199
      %p206 = scmp.eq.s32.totalorder %s23, 1
      %p207 = por %p205, %p206
      %p208 = scmp.ne.s32.totalorder %s199, %s200
      %p209 = scmp.eq.s32.totalorder %s23, 0
      %p210 = por %p208, %p209
      %p211 = scmp.ne.s32.totalorder %s199, %s200
      %p212 = scmp.eq.s32.totalorder %s24, 1
      %p213 = por %p211, %p212
      %p215 = scmp.ne.s32.totalorder %s200, %s214
      %p216 = scmp.eq.s32.totalorder %s24, 0
      %p217 = por %p215, %p216
      %s219 = sadd.s32 %s218, 1
      %p222 = scmp.eq.s32.totalorder %s18, 1
      %p223 = scmp.ne.s32.totalorder %s218, %s220
      %p224 = scmp.eq.s32.totalorder %s18, 0
      %p225 = por %p223, %p224
      %p226 = scmp.ne.s32.totalorder %s218, %s220
      %p227 = scmp.eq.s32.totalorder %s23, 1
      %p228 = por %p226, %p227
      %p229 = scmp.ne.s32.totalorder %s220, %s221
      %p230 = scmp.eq.s32.totalorder %s23, 0
      %p231 = por %p229, %p230
      %p232 = scmp.ne.s32.totalorder %s220, %s221
      %p233 = scmp.eq.s32.totalorder %s24, 1
      %p234 = por %p232, %p233
      %p236 = scmp.ne.s32.totalorder %s221, %s235
      %p237 = scmp.eq.s32.totalorder %s24, 0
      %p238 = por %p236, %p237
      %s240 = sadd.s32 %s239, 1
      %p243 = scmp.eq.s32.totalorder %s18, 1
      %p244 = scmp.ne.s32.totalorder %s239, %s241
      %p245 = scmp.eq.s32.totalorder %s18, 0
      %p246 = por %p244, %p245
      %p247 = scmp.ne.s32.totalorder %s239, %s241
      %p248 = scmp.eq.s32.totalorder %s23, 1
      %p249 = por %p247, %p248
      %p250 = scmp.ne.s32.totalorder %s241, %s242
      %p251 = scmp.eq.s32.totalorder %s23, 0
      %p252 = por %p250, %p251
      %p253 = scmp.ne.s32.totalorder %s241, %s242
      %p254 = scmp.eq.s32.totalorder %s24, 1
      %p255 = por %p253, %p254
      %p257 = scmp.ne.s32.totalorder %s242, %s256
      %p258 = scmp.eq.s32.totalorder %s24, 0
      %p259 = por %p257, %p258
      %s260 = ssub.s32 %s25, %s37
      %p261 = scmp.eq.s32.totalorder %s260, 0
      %s263 = sadd.s32 %s262, 1
      %s264 = scalar_select %p261, %s262, %s263
      %p267 = pneg %p261
      %p268 = scmp.eq.s32.totalorder %s18, 1
      %p269 = por %p267, %p268
      %p270 = scmp.ne.s32.totalorder %s262, %s265
      %p271 = scmp.eq.s32.totalorder %s18, 0
      %p272 = por %p270, %p271
      %p273 = scmp.ne.s32.totalorder %s262, %s265
      %p274 = scmp.eq.s32.totalorder %s23, 1
      %p275 = por %p273, %p274
      %p276 = scmp.ne.s32.totalorder %s265, %s266
      %p277 = scmp.eq.s32.totalorder %s23, 0
      %p278 = por %p276, %p277
      %p279 = scmp.ne.s32.totalorder %s265, %s266
      %p280 = scmp.eq.s32.totalorder %s24, 1
      %p281 = por %p279, %p280
      %p283 = scmp.ne.s32.totalorder %s266, %s282
      %p284 = scmp.eq.s32.totalorder %s24, 0
      %p285 = por %p283, %p284
      %p286 = scmp.le.s32.totalorder 1, %s18
      %p287 = scmp.lt.s32.totalorder %s18, 3
      %p288 = pnand %p286, %p287
      %p289 = pneg %p288
      // Predicated region
      $region9: #{combined_transfer_forward.1} parent=5 // pred_check
        _
      $region10: #{combined_transfer_forward.1} parent=5 // pred_check_branch
        %291 = sbr.rel (%p288) target = $region12
      $region11: #{combined_transfer_forward.1} parent=5 // pred_region
        %s292 = ssub.s32 %s18, 1
        // Predicated region
        $region13: #{combined_transfer_forward.1} parent=11 // pred_check
          %p293 = pneg %p105
        $region14: #{combined_transfer_forward.1} parent=11 // pred_check_branch
          %295 = sbr.rel (%p293) target = $region16
        $region15: #{combined_transfer_forward.1} parent=11 // pred_region
          _
        $region16: #{combined_transfer_forward.1} parent=11 // pred_fallthru
          _
        // Predicated region
        $region17: #{combined_transfer_forward.1} parent=11 // pred_check
          %p296 = pneg %p126
        $region18: #{combined_transfer_forward.1} parent=11 // pred_check_branch
          %298 = sbr.rel (%p296) target = $region20
        $region19: #{combined_transfer_forward.1} parent=11 // pred_region
          _
        $region20: #{combined_transfer_forward.1} parent=11 // pred_fallthru
          _
        // Predicated region
        $region21: #{combined_transfer_forward.1} parent=11 // pred_check
          %p299 = pneg %p147
        $region22: #{combined_transfer_forward.1} parent=11 // pred_check_branch
          %301 = sbr.rel (%p299) target = $region24
        $region23: #{combined_transfer_forward.1} parent=11 // pred_region
          _
        $region24: #{combined_transfer_forward.1} parent=11 // pred_fallthru
          _
        // Predicated region
        $region25: #{combined_transfer_forward.1} parent=11 // pred_check
          %p302 = pneg %p168
        $region26: #{combined_transfer_forward.1} parent=11 // pred_check_branch
          %304 = sbr.rel (%p302) target = $region28
        $region27: #{combined_transfer_forward.1} parent=11 // pred_region
          _
        $region28: #{combined_transfer_forward.1} parent=11 // pred_fallthru
          _
        // Predicated region
        $region29: #{combined_transfer_forward.1} parent=11 // pred_check
          %p305 = pneg %p189
        $region30: #{combined_transfer_forward.1} parent=11 // pred_check_branch
          %307 = sbr.rel (%p305) target = $region32
        $region31: #{combined_transfer_forward.1} parent=11 // pred_region
          _
        $region32: #{combined_transfer_forward.1} parent=11 // pred_fallthru
          _
        // Predicated region
        $region33: #{combined_transfer_forward.1} parent=11 // pred_check
          %p308 = pneg %p210
        $region34: #{combined_transfer_forward.1} parent=11 // pred_check_branch
          %310 = sbr.rel (%p308) target = $region36
        $region35: #{combined_transfer_forward.1} parent=11 // pred_region
          _
        $region36: #{combined_transfer_forward.1} parent=11 // pred_fallthru
          _
        // Predicated region
        $region37: #{combined_transfer_forward.1} parent=11 // pred_check
          %p311 = pneg %p231
        $region38: #{combined_transfer_forward.1} parent=11 // pred_check_branch
          %313 = sbr.rel (%p311) target = $region40
        $region39: #{combined_transfer_forward.1} parent=11 // pred_region
          _
        $region40: #{combined_transfer_forward.1} parent=11 // pred_fallthru
          _
        // Predicated region
        $region41: #{combined_transfer_forward.1} parent=11 // pred_check
          %p314 = pneg %p252
        $region42: #{combined_transfer_forward.1} parent=11 // pred_check_branch
          %316 = sbr.rel (%p314) target = $region44
        $region43: #{combined_transfer_forward.1} parent=11 // pred_region
          _
        $region44: #{combined_transfer_forward.1} parent=11 // pred_fallthru
          _
      $region12: #{combined_transfer_forward.1} parent=5 // pred_fallthru
        _
      %p317 = scmp.lt.s32.totalorder %s18, 2
      // Predicated region
      $region45: #{combined_transfer_forward.1} parent=5 // pred_check
        %p318 = pneg %p317
      $region46: #{combined_transfer_forward.1} parent=5 // pred_check_branch
        %320 = sbr.rel (%p318) target = $region48
      $region47: #{combined_transfer_forward.1} parent=5 // pred_region
        // Predicated region
        $region49: #{combined_transfer_forward.1} parent=47 // pred_check
          %p321 = pneg %p52
        $region50: #{combined_transfer_forward.1} parent=47 // pred_check_branch
          %323 = sbr.rel (%p321) target = $region52
        $region51: #{combined_transfer_forward.1} parent=47 // pred_region
          %s324 = sand.u32 %s42, 1
          %s325 = sand.u32 %s42, 1
          %s326 = smul.addr %s325, 32
          %s327 = scalar_lea.vmem [#allocation4], %s326
          %s328 = smul.u32 2, %s25
          %s329 = smul.u32 4, %s26
          %s330 = smul.addr %s328, 8
          %s331 = sadd.s32 %s329, %s330
          %s332 = smul.addr %s331, 4
          %s333 = scalar_lea.vmem %s0, %s332
          // Predicated region
          $region53: #{combined_transfer_forward.1} parent=51 // pred_check
            _
          $region54: #{combined_transfer_forward.1} parent=51 // pred_check_branch
            %335 = sbr.rel (0) target = $region56
          $region55: #{combined_transfer_forward.1} parent=51 // pred_region
            // Predicated region
            $region57: #{combined_transfer_forward.1} parent=55 // pred_check
              _
            $region58: #{combined_transfer_forward.1} parent=55 // pred_check_branch
              %337 = sbr.rel (0) target = $region60
            $region59: #{combined_transfer_forward.1} parent=55 // pred_region
              loop: start=0, step=1, limit=1
              $region61: #{combined_transfer_forward.1} parent=59 // loop_pre_header
                _
              $region62: #{combined_transfer_forward.1} parent=59 // loop_header
                %s339 = sphi 0, %s343
                %p340 = scmp.ge.s32.totalorder %s339, 1
                %s344 = sphi %s333, %s333
                %s345 = sphi %s327, %s327
              $region63: #{combined_transfer_forward.1} parent=59 // loop_header_branch
                %342 = sbr.rel (%p340) target = $region67
              $region64: #{combined_transfer_forward.1} parent=59 // loop_body
                %v346 = vld [vmem:[%s344] sm:$0xff]
                %347 = vst [vmem:[%s345] sm:$0xff] %v346
                %v348 = vld [vmem:[%s344 + $0x8] sm:$0xff]
                %349 = vst [vmem:[%s345 + $0x8] sm:$0xff] %v348
                %v350 = vld [vmem:[%s344 + $0x20] sm:$0xff]
                %351 = vst [vmem:[%s345 + $0x10] sm:$0xff] %v350
                %v352 = vld [vmem:[%s344 + $0x28] sm:$0xff]
                %353 = vst [vmem:[%s345 + $0x18] sm:$0xff] %v352
              $region65: #{combined_transfer_forward.1} parent=59 // loop_footer
                %s343 = sadd.s32 1, %s339
              $region66: #{combined_transfer_forward.1} parent=59 // loop_footer_branch
                %338 = sbr.rel target = $region62
              $region67: #{combined_transfer_forward.1} parent=59 // loop_exit
                _
            $region60: #{combined_transfer_forward.1} parent=55 // pred_fallthru
              _
            // Predicated region
            $region68: #{combined_transfer_forward.1} parent=55 // pred_check
              _
            $region69: #{combined_transfer_forward.1} parent=55 // pred_check_branch
              %355 = sbr.rel target = $region71
            $region70: #{combined_transfer_forward.1} parent=55 // pred_region
              _
            $region71: #{combined_transfer_forward.1} parent=55 // pred_fallthru
              _
          $region56: #{combined_transfer_forward.1} parent=51 // pred_fallthru
            _
          %356 = vnop
        $region52: #{combined_transfer_forward.1} parent=47 // pred_fallthru
          _
        // Predicated region
        $region72: #{combined_transfer_forward.1} parent=47 // pred_check
          %p357 = pneg %p78
        $region73: #{combined_transfer_forward.1} parent=47 // pred_check_branch
          %359 = sbr.rel (%p357) target = $region75
        $region74: #{combined_transfer_forward.1} parent=47 // pred_region
          %s360 = smul.u32 64, %s26
          %p361 = scmp.lt.s32.totalorder %s360, 127
          %s362 = scalar_select %p361, %s360, 127
          %s363 = smul.addr %s362, 3
          %s364 = smul.addr %s363, 4
          %s365 = scalar_lea.vmem %s1, %s364
          %s366 = smul.u32 64, %s26
        $region75: #{combined_transfer_forward.1} parent=47 // pred_fallthru
          _
      $region48: #{combined_transfer_forward.1} parent=5 // pred_fallthru
        _
      %p367 = scmp.le.s32.totalorder 1, %s18
      %p368 = scmp.lt.s32.totalorder %s18, 3
      %p369 = pnand %p367, %p368
      %p370 = pneg %p369
      // Predicated region
      $region76: #{combined_transfer_forward.1} parent=5 // pred_check
        _
      $region77: #{combined_transfer_forward.1} parent=5 // pred_check_branch
        %372 = sbr.rel (%p369) target = $region79
      $region78: #{combined_transfer_forward.1} parent=5 // pred_region
        %s373 = ssub.s32 %s18, 1
        %s374 = sand.u32 %s45, 1
        %s375 = sand.u32 %s45, 1
        %s376 = smul.addr %s375, 32
        %s377 = scalar_lea.vmem [#allocation4], %s376
        // Predicated region
        $region80: #{combined_transfer_forward.1} parent=78 // pred_check
          %p378 = pneg %p58
        $region81: #{combined_transfer_forward.1} parent=78 // pred_check_branch
          %380 = sbr.rel (%p378) target = $region83
        $region82: #{combined_transfer_forward.1} parent=78 // pred_region
          _
        $region83: #{combined_transfer_forward.1} parent=78 // pred_fallthru
          _
        %s381 = sand.u32 %s45, 1
        %s382 = sand.u32 %s45, 1
        %s383 = smul.addr %s382, 32
        %s384 = scalar_lea.vmem [#allocation4], %s383
        %p385 = pneg %p58
        %p386 = pneg %p55
        %s387 = smul.u32 64, %s28
        %p388 = scmp.lt.s32.totalorder %s387, 127
        %s389 = scalar_select %p388, %s387, 127
        %s390 = smul.addr %s389, 3
        %s391 = smul.addr %s390, 4
        %s392 = scalar_lea.vmem %s1, %s391
        %p393 = pneg %p84
        %p394 = pneg %p81
        %p395 = pneg %p105
        %p396 = pneg %p102
        %p397 = pneg %p126
        %p398 = pneg %p123
        %p399 = pneg %p147
        %p400 = pneg %p144
        %p401 = pneg %p168
        %p402 = pneg %p165
        %p403 = pneg %p189
        %p404 = pneg %p186
        %p405 = pneg %p210
        %p406 = pneg %p207
        %p407 = pneg %p231
        %p408 = pneg %p228
        %p409 = pneg %p252
        %p410 = pneg %p249
        %p411 = pneg %p278
        %p412 = pneg %p275
        %s413 = smul.u32 2, %s27
        %p414 = scmp.lt.s32.totalorder %s413, 1
        %s415 = scalar_select %p414, %s413, 1
        %s416 = smul.addr %s415, 8
        %s417 = scalar_lea.vmem %s10, %s416
        %s418 = smul.u32 2, %s27
        %s419 = smul.u32 4, %s28
        %s420 = smul.u32 64, %s28
        %p421 = scmp.lt.s32.totalorder %s420, 127
        %s422 = scalar_select %p421, %s420, 127
        %s423 = smul.addr %s422, 3
        %s424 = smul.addr %s423, 4
        %s425 = scalar_lea.vmem %s1, %s424
        %s426 = smul.u32 64, %s28
        %s427 = smul.u32 2, %s27
        %p428 = scmp.lt.s32.totalorder %s427, 1
        %s429 = scalar_select %p428, %s427, 1
        %s430 = smul.addr %s429, 8
        %s431 = scalar_lea.vmem %s10, %s430
        %s432 = smul.u32 2, %s27
        %p434 = scmp.eq.s32.totalorder %s28, 0
        // Predicated region
        $region84: #{combined_transfer_forward.1} parent=78 // pred_check
          %p435 = pneg %p434
        $region85: #{combined_transfer_forward.1} parent=78 // pred_check_branch
          %437 = sbr.rel (%p435) target = $region87
        $region86: #{combined_transfer_forward.1} parent=78 // pred_region
          %438 = vst [vmem:[#allocation2] sm:$0xff] 0.0
          %439 = vst [vmem:[#allocation2 + $0x8] sm:$0xff] 0.0
          %440 = vst [vmem:[#allocation2 + $0x10] sm:$0xff] 0.0
          %441 = vst [vmem:[#allocation2 + $0x18] sm:$0xff] 0.0
          %442 = vst [vmem:[#allocation2 + $0x20] sm:$0xff] 0.0
          %443 = vst [vmem:[#allocation2 + $0x28] sm:$0xff] 0.0
        $region87: #{combined_transfer_forward.1} parent=78 // pred_fallthru
          _
        %v444 = vld [vmem:[#allocation2] sm:$0xff]
        %v445 = vld [vmem:[#allocation2 + $0x8] sm:$0xff]
        %v446 = vld [vmem:[#allocation2 + $0x10] sm:$0xff]
        %v447 = vld [vmem:[#allocation2 + $0x18] sm:$0xff]
        %v448 = vld [vmem:[#allocation2 + $0x20] sm:$0xff]
        %v449 = vld [vmem:[#allocation2 + $0x28] sm:$0xff]
        %v450 = vld [vmem:[%s377] sm:$0xff]
        %v451 = vld [vmem:[%s377 + $0x8] sm:$0xff]
        %v452 = vld [vmem:[%s377 + $0x10] sm:$0xff]
        %v453 = vld [vmem:[%s377 + $0x18] sm:$0xff]
        %v454 = vld [vmem:[%s425] sm:$0xff]
        %v455 = vld [vmem:[%s425 + $0x8] sm:$0xf]
        %v456 = vld [vmem:[%s425 + $0xc] sm:$0xff]
        %v457 = vld [vmem:[%s425 + $0x14] sm:$0xf]
        %v458 = vld [vmem:[%s425 + $0x18] sm:$0xff]
        %v459 = vld [vmem:[%s425 + $0x20] sm:$0xf]
        %v460 = vld [vmem:[%s425 + $0x24] sm:$0xff]
        %v461 = vld [vmem:[%s425 + $0x2c] sm:$0xf]
        %v462 = vld [vmem:[%s425 + $0x30] sm:$0xff]
        %v463 = vld [vmem:[%s425 + $0x38] sm:$0xf]
        %v464 = vld [vmem:[%s425 + $0x3c] sm:$0xff]
        %v465 = vld [vmem:[%s425 + $0x44] sm:$0xf]
        %v466 = vld [vmem:[%s425 + $0x48] sm:$0xff]
        %v467 = vld [vmem:[%s425 + $0x50] sm:$0xf]
        %v468 = vld [vmem:[%s425 + $0x54] sm:$0xff]
        %v469 = vld [vmem:[%s425 + $0x5c] sm:$0xf]
        %v470 = vld [vmem:[%s425 + $0x60] sm:$0xff]
        %v471 = vld [vmem:[%s425 + $0x68] sm:$0xf]
        %v472 = vld [vmem:[%s425 + $0x6c] sm:$0xff]
        %v473 = vld [vmem:[%s425 + $0x74] sm:$0xf]
        %v474 = vld [vmem:[%s425 + $0x78] sm:$0xff]
        %v475 = vld [vmem:[%s425 + $0x80] sm:$0xf]
        %v476 = vld [vmem:[%s425 + $0x84] sm:$0xff]
        %v477 = vld [vmem:[%s425 + $0x8c] sm:$0xf]
        %v478 = vld [vmem:[%s425 + $0x90] sm:$0xff]
        %v479 = vld [vmem:[%s425 + $0x98] sm:$0xf]
        %v480 = vld [vmem:[%s425 + $0x9c] sm:$0xff]
        %v481 = vld [vmem:[%s425 + $0xa4] sm:$0xf]
        %v482 = vld [vmem:[%s425 + $0xa8] sm:$0xff]
        %v483 = vld [vmem:[%s425 + $0xb0] sm:$0xf]
        %v484 = vld [vmem:[%s425 + $0xb4] sm:$0xff]
        %v485 = vld [vmem:[%s425 + $0xbc] sm:$0xf]
        %v486 = vld [vmem:[%s425 + $0xc0] sm:$0xff]
        %v487 = vld [vmem:[%s425 + $0xc8] sm:$0xf]
        %v488 = vld [vmem:[%s425 + $0xcc] sm:$0xff]
        %v489 = vld [vmem:[%s425 + $0xd4] sm:$0xf]
        %v490 = vld [vmem:[%s425 + $0xd8] sm:$0xff]
        %v491 = vld [vmem:[%s425 + $0xe0] sm:$0xf]
        %v492 = vld [vmem:[%s425 + $0xe4] sm:$0xff]
        %v493 = vld [vmem:[%s425 + $0xec] sm:$0xf]
        %v494 = vld [vmem:[%s425 + $0xf0] sm:$0xff]
        %v495 = vld [vmem:[%s425 + $0xf8] sm:$0xf]
        %v496 = vld [vmem:[%s425 + $0xfc] sm:$0xff]
        %v497 = vld [vmem:[%s425 + $0x104] sm:$0xf]
        %v498 = vld [vmem:[%s425 + $0x108] sm:$0xff]
        %v499 = vld [vmem:[%s425 + $0x110] sm:$0xf]
        %v500 = vld [vmem:[%s425 + $0x114] sm:$0xff]
        %v501 = vld [vmem:[%s425 + $0x11c] sm:$0xf]
        %v502 = vld [vmem:[%s425 + $0x120] sm:$0xff]
        %v503 = vld [vmem:[%s425 + $0x128] sm:$0xf]
        %v504 = vld [vmem:[%s425 + $0x12c] sm:$0xff]
        %v505 = vld [vmem:[%s425 + $0x134] sm:$0xf]
        %v506 = vld [vmem:[%s425 + $0x138] sm:$0xff]
        %v507 = vld [vmem:[%s425 + $0x140] sm:$0xf]
        %v508 = vld [vmem:[%s425 + $0x144] sm:$0xff]
        %v509 = vld [vmem:[%s425 + $0x14c] sm:$0xf]
        %v510 = vld [vmem:[%s425 + $0x150] sm:$0xff]
        %v511 = vld [vmem:[%s425 + $0x158] sm:$0xf]
        %v512 = vld [vmem:[%s425 + $0x15c] sm:$0xff]
        %v513 = vld [vmem:[%s425 + $0x164] sm:$0xf]
        %v514 = vld [vmem:[%s425 + $0x168] sm:$0xff]
        %v515 = vld [vmem:[%s425 + $0x170] sm:$0xf]
        %v516 = vld [vmem:[%s425 + $0x174] sm:$0xff]
        %v517 = vld [vmem:[%s425 + $0x17c] sm:$0xf]
        %v518 = vld [vmem:[%s425 + $0x180] sm:$0xff]
        %v519 = vld [vmem:[%s425 + $0x188] sm:$0xf]
        %v520 = vld [vmem:[%s425 + $0x18c] sm:$0xff]
        %v521 = vld [vmem:[%s425 + $0x194] sm:$0xf]
        %v522 = vld [vmem:[%s425 + $0x198] sm:$0xff]
        %v523 = vld [vmem:[%s425 + $0x1a0] sm:$0xf]
        %v524 = vld [vmem:[%s425 + $0x1a4] sm:$0xff]
        %v525 = vld [vmem:[%s425 + $0x1ac] sm:$0xf]
        %v526 = vld [vmem:[%s425 + $0x1b0] sm:$0xff]
        %v527 = vld [vmem:[%s425 + $0x1b8] sm:$0xf]
        %v528 = vld [vmem:[%s425 + $0x1bc] sm:$0xff]
        %v529 = vld [vmem:[%s425 + $0x1c4] sm:$0xf]
        %v530 = vld [vmem:[%s425 + $0x1c8] sm:$0xff]
        %v531 = vld [vmem:[%s425 + $0x1d0] sm:$0xf]
        %v532 = vld [vmem:[%s425 + $0x1d4] sm:$0xff]
        %v533 = vld [vmem:[%s425 + $0x1dc] sm:$0xf]
        %v534 = vld [vmem:[%s425 + $0x1e0] sm:$0xff]
        %v535 = vld [vmem:[%s425 + $0x1e8] sm:$0xf]
        %v536 = vld [vmem:[%s425 + $0x1ec] sm:$0xff]
        %v537 = vld [vmem:[%s425 + $0x1f4] sm:$0xf]
        %v538 = vld [vmem:[%s425 + $0x1f8] sm:$0xff]
        %v539 = vld [vmem:[%s425 + $0x200] sm:$0xf]
        %v540 = vld [vmem:[%s425 + $0x204] sm:$0xff]
        %v541 = vld [vmem:[%s425 + $0x20c] sm:$0xf]
        %v542 = vld [vmem:[%s425 + $0x210] sm:$0xff]
        %v543 = vld [vmem:[%s425 + $0x218] sm:$0xf]
        %v544 = vld [vmem:[%s425 + $0x21c] sm:$0xff]
        %v545 = vld [vmem:[%s425 + $0x224] sm:$0xf]
        %v546 = vld [vmem:[%s425 + $0x228] sm:$0xff]
        %v547 = vld [vmem:[%s425 + $0x230] sm:$0xf]
        %v548 = vld [vmem:[%s425 + $0x234] sm:$0xff]
        %v549 = vld [vmem:[%s425 + $0x23c] sm:$0xf]
        %v550 = vld [vmem:[%s425 + $0x240] sm:$0xff]
        %v551 = vld [vmem:[%s425 + $0x248] sm:$0xf]
        %v552 = vld [vmem:[%s425 + $0x24c] sm:$0xff]
        %v553 = vld [vmem:[%s425 + $0x254] sm:$0xf]
        %v554 = vld [vmem:[%s425 + $0x258] sm:$0xff]
        %v555 = vld [vmem:[%s425 + $0x260] sm:$0xf]
        %v556 = vld [vmem:[%s425 + $0x264] sm:$0xff]
        %v557 = vld [vmem:[%s425 + $0x26c] sm:$0xf]
        %v558 = vld [vmem:[%s425 + $0x270] sm:$0xff]
        %v559 = vld [vmem:[%s425 + $0x278] sm:$0xf]
        %v560 = vld [vmem:[%s425 + $0x27c] sm:$0xff]
        %v561 = vld [vmem:[%s425 + $0x284] sm:$0xf]
        %v562 = vld [vmem:[%s425 + $0x288] sm:$0xff]
        %v563 = vld [vmem:[%s425 + $0x290] sm:$0xf]
        %v564 = vld [vmem:[%s425 + $0x294] sm:$0xff]
        %v565 = vld [vmem:[%s425 + $0x29c] sm:$0xf]
        %v566 = vld [vmem:[%s425 + $0x2a0] sm:$0xff]
        %v567 = vld [vmem:[%s425 + $0x2a8] sm:$0xf]
        %v568 = vld [vmem:[%s425 + $0x2ac] sm:$0xff]
        %v569 = vld [vmem:[%s425 + $0x2b4] sm:$0xf]
        %v570 = vld [vmem:[%s425 + $0x2b8] sm:$0xff]
        %v571 = vld [vmem:[%s425 + $0x2c0] sm:$0xf]
        %v572 = vld [vmem:[%s425 + $0x2c4] sm:$0xff]
        %v573 = vld [vmem:[%s425 + $0x2cc] sm:$0xf]
        %v574 = vld [vmem:[%s425 + $0x2d0] sm:$0xff]
        %v575 = vld [vmem:[%s425 + $0x2d8] sm:$0xf]
        %v576 = vld [vmem:[%s425 + $0x2dc] sm:$0xff]
        %v577 = vld [vmem:[%s425 + $0x2e4] sm:$0xf]
        %v578 = vld [vmem:[%s425 + $0x2e8] sm:$0xff]
        %v579 = vld [vmem:[%s425 + $0x2f0] sm:$0xf]
        %v580 = vld [vmem:[%s425 + $0x2f4] sm:$0xff]
        %v581 = vld [vmem:[%s425 + $0x2fc] sm:$0xf]
        %v586 = vunpack.c.l.b16 %v450
        %v587 = vunpack.c.h.b16 %v450
        %v588 = vunpack.c.l.b16 %v451
        %v589 = vunpack.c.h.b16 %v451
        %v590 = vunpack.c.l.b16 %v452
        %v591 = vunpack.c.h.b16 %v452
        %v592 = vunpack.c.l.b16 %v453
        %v593 = vunpack.c.h.b16 %v453
        %v594 = vpack.c.b16 %v590, %v586
        %v595 = vpack.c.b16 %v591, %v587
        %v596 = vpack.c.b16 %v592, %v588
        %v597 = vpack.c.b16 %v593, %v589
        %v730 = vunpack.c.l.b16 %v454
        %v731 = vunpack.c.h.b16 %v454
        %v732 = vunpack.c.l.b16 %v455
        %v733 = vunpack.c.l.b16 %v456
        %v734 = vunpack.c.h.b16 %v456
        %v735 = vunpack.c.l.b16 %v457
        %v736 = vunpack.c.l.b16 %v458
        %v737 = vunpack.c.h.b16 %v458
        %v738 = vunpack.c.l.b16 %v459
        %v739 = vunpack.c.l.b16 %v460
        %v740 = vunpack.c.h.b16 %v460
        %v741 = vunpack.c.l.b16 %v461
        %v742 = vunpack.c.l.b16 %v462
        %v743 = vunpack.c.h.b16 %v462
        %v744 = vunpack.c.l.b16 %v463
        %v745 = vunpack.c.l.b16 %v464
        %v746 = vunpack.c.h.b16 %v464
        %v747 = vunpack.c.l.b16 %v465
        %v748 = vunpack.c.l.b16 %v466
        %v749 = vunpack.c.h.b16 %v466
        %v750 = vunpack.c.l.b16 %v467
        %v751 = vunpack.c.l.b16 %v468
        %v752 = vunpack.c.h.b16 %v468
        %v753 = vunpack.c.l.b16 %v469
        %v754 = vunpack.c.l.b16 %v470
        %v755 = vunpack.c.h.b16 %v470
        %v756 = vunpack.c.l.b16 %v471
        %v757 = vunpack.c.l.b16 %v472
        %v758 = vunpack.c.h.b16 %v472
        %v759 = vunpack.c.l.b16 %v473
        %v760 = vunpack.c.l.b16 %v474
        %v761 = vunpack.c.h.b16 %v474
        %v762 = vunpack.c.l.b16 %v475
        %v763 = vunpack.c.l.b16 %v476
        %v764 = vunpack.c.h.b16 %v476
        %v765 = vunpack.c.l.b16 %v477
        %v766 = vunpack.c.l.b16 %v478
        %v767 = vunpack.c.h.b16 %v478
        %v768 = vunpack.c.l.b16 %v479
        %v769 = vunpack.c.l.b16 %v480
        %v770 = vunpack.c.h.b16 %v480
        %v771 = vunpack.c.l.b16 %v481
        %v772 = vunpack.c.l.b16 %v482
        %v773 = vunpack.c.h.b16 %v482
        %v774 = vunpack.c.l.b16 %v483
        %v775 = vunpack.c.l.b16 %v484
        %v776 = vunpack.c.h.b16 %v484
        %v777 = vunpack.c.l.b16 %v485
        %v778 = vunpack.c.l.b16 %v486
        %v779 = vunpack.c.h.b16 %v486
        %v780 = vunpack.c.l.b16 %v487
        %v781 = vunpack.c.l.b16 %v488
        %v782 = vunpack.c.h.b16 %v488
        %v783 = vunpack.c.l.b16 %v489
        %v784 = vunpack.c.l.b16 %v490
        %v785 = vunpack.c.h.b16 %v490
        %v786 = vunpack.c.l.b16 %v491
        %v787 = vunpack.c.l.b16 %v492
        %v788 = vunpack.c.h.b16 %v492
        %v789 = vunpack.c.l.b16 %v493
        %v790 = vunpack.c.l.b16 %v494
        %v791 = vunpack.c.h.b16 %v494
        %v792 = vunpack.c.l.b16 %v495
        %v793 = vunpack.c.l.b16 %v496
        %v794 = vunpack.c.h.b16 %v496
        %v795 = vunpack.c.l.b16 %v497
        %v796 = vunpack.c.l.b16 %v498
        %v797 = vunpack.c.h.b16 %v498
        %v798 = vunpack.c.l.b16 %v499
        %v799 = vunpack.c.l.b16 %v500
        %v800 = vunpack.c.h.b16 %v500
        %v801 = vunpack.c.l.b16 %v501
        %v802 = vunpack.c.l.b16 %v502
        %v803 = vunpack.c.h.b16 %v502
        %v804 = vunpack.c.l.b16 %v503
        %v805 = vunpack.c.l.b16 %v504
        %v806 = vunpack.c.h.b16 %v504
        %v807 = vunpack.c.l.b16 %v505
        %v808 = vunpack.c.l.b16 %v506
        %v809 = vunpack.c.h.b16 %v506
        %v810 = vunpack.c.l.b16 %v507
        %v811 = vunpack.c.l.b16 %v508
        %v812 = vunpack.c.h.b16 %v508
        %v813 = vunpack.c.l.b16 %v509
        %v814 = vunpack.c.l.b16 %v510
        %v815 = vunpack.c.h.b16 %v510
        %v816 = vunpack.c.l.b16 %v511
        %v817 = vunpack.c.l.b16 %v512
        %v818 = vunpack.c.h.b16 %v512
        %v819 = vunpack.c.l.b16 %v513
        %v820 = vunpack.c.l.b16 %v514
        %v821 = vunpack.c.h.b16 %v514
        %v822 = vunpack.c.l.b16 %v515
        %v823 = vunpack.c.l.b16 %v516
        %v824 = vunpack.c.h.b16 %v516
        %v825 = vunpack.c.l.b16 %v517
        %v826 = vunpack.c.l.b16 %v518
        %v827 = vunpack.c.h.b16 %v518
        %v828 = vunpack.c.l.b16 %v519
        %v829 = vunpack.c.l.b16 %v520
        %v830 = vunpack.c.h.b16 %v520
        %v831 = vunpack.c.l.b16 %v521
        %v832 = vunpack.c.l.b16 %v522
        %v833 = vunpack.c.h.b16 %v522
        %v834 = vunpack.c.l.b16 %v523
        %v835 = vunpack.c.l.b16 %v524
        %v836 = vunpack.c.h.b16 %v524
        %v837 = vunpack.c.l.b16 %v525
        %v838 = vunpack.c.l.b16 %v526
        %v839 = vunpack.c.h.b16 %v526
        %v840 = vunpack.c.l.b16 %v527
        %v841 = vunpack.c.l.b16 %v528
        %v842 = vunpack.c.h.b16 %v528
        %v843 = vunpack.c.l.b16 %v529
        %v844 = vunpack.c.l.b16 %v530
        %v845 = vunpack.c.h.b16 %v530
        %v846 = vunpack.c.l.b16 %v531
        %v847 = vunpack.c.l.b16 %v532
        %v848 = vunpack.c.h.b16 %v532
        %v849 = vunpack.c.l.b16 %v533
        %v850 = vunpack.c.l.b16 %v534
        %v851 = vunpack.c.h.b16 %v534
        %v852 = vunpack.c.l.b16 %v535
        %v853 = vunpack.c.l.b16 %v536
        %v854 = vunpack.c.h.b16 %v536
        %v855 = vunpack.c.l.b16 %v537
        %v856 = vunpack.c.l.b16 %v538
        %v857 = vunpack.c.h.b16 %v538
        %v858 = vunpack.c.l.b16 %v539
        %v859 = vunpack.c.l.b16 %v540
        %v860 = vunpack.c.h.b16 %v540
        %v861 = vunpack.c.l.b16 %v541
        %v862 = vunpack.c.l.b16 %v542
        %v863 = vunpack.c.h.b16 %v542
        %v864 = vunpack.c.l.b16 %v543
        %v865 = vunpack.c.l.b16 %v544
        %v866 = vunpack.c.h.b16 %v544
        %v867 = vunpack.c.l.b16 %v545
        %v868 = vunpack.c.l.b16 %v546
        %v869 = vunpack.c.h.b16 %v546
        %v870 = vunpack.c.l.b16 %v547
        %v871 = vunpack.c.l.b16 %v548
        %v872 = vunpack.c.h.b16 %v548
        %v873 = vunpack.c.l.b16 %v549
        %v874 = vunpack.c.l.b16 %v550
        %v875 = vunpack.c.h.b16 %v550
        %v876 = vunpack.c.l.b16 %v551
        %v877 = vunpack.c.l.b16 %v552
        %v878 = vunpack.c.h.b16 %v552
        %v879 = vunpack.c.l.b16 %v553
        %v880 = vunpack.c.l.b16 %v554
        %v881 = vunpack.c.h.b16 %v554
        %v882 = vunpack.c.l.b16 %v555
        %v883 = vunpack.c.l.b16 %v556
        %v884 = vunpack.c.h.b16 %v556
        %v885 = vunpack.c.l.b16 %v557
        %v886 = vunpack.c.l.b16 %v558
        %v887 = vunpack.c.h.b16 %v558
        %v888 = vunpack.c.l.b16 %v559
        %v889 = vunpack.c.l.b16 %v560
        %v890 = vunpack.c.h.b16 %v560
        %v891 = vunpack.c.l.b16 %v561
        %v892 = vunpack.c.l.b16 %v562
        %v893 = vunpack.c.h.b16 %v562
        %v894 = vunpack.c.l.b16 %v563
        %v895 = vunpack.c.l.b16 %v564
        %v896 = vunpack.c.h.b16 %v564
        %v897 = vunpack.c.l.b16 %v565
        %v898 = vunpack.c.l.b16 %v566
        %v899 = vunpack.c.h.b16 %v566
        %v900 = vunpack.c.l.b16 %v567
        %v901 = vunpack.c.l.b16 %v568
        %v902 = vunpack.c.h.b16 %v568
        %v903 = vunpack.c.l.b16 %v569
        %v904 = vunpack.c.l.b16 %v570
        %v905 = vunpack.c.h.b16 %v570
        %v906 = vunpack.c.l.b16 %v571
        %v907 = vunpack.c.l.b16 %v572
        %v908 = vunpack.c.h.b16 %v572
        %v909 = vunpack.c.l.b16 %v573
        %v910 = vunpack.c.l.b16 %v574
        %v911 = vunpack.c.h.b16 %v574
        %v912 = vunpack.c.l.b16 %v575
        %v913 = vunpack.c.l.b16 %v576
        %v914 = vunpack.c.h.b16 %v576
        %v915 = vunpack.c.l.b16 %v577
        %v916 = vunpack.c.l.b16 %v578
        %v917 = vunpack.c.h.b16 %v578
        %v918 = vunpack.c.l.b16 %v579
        %v919 = vunpack.c.l.b16 %v580
        %v920 = vunpack.c.h.b16 %v580
        %v921 = vunpack.c.l.b16 %v581
        %v922 = vpack.c.b16 %v733, %v730
        %v923 = vpack.c.b16 %v734, %v731
        %v924 = vpack.c.b16 %v735, %v732
        %v925 = vpack.c.b16 %v739, %v736
        %v926 = vpack.c.b16 %v740, %v737
        %v927 = vpack.c.b16 %v741, %v738
        %v928 = vpack.c.b16 %v745, %v742
        %v929 = vpack.c.b16 %v746, %v743
        %v930 = vpack.c.b16 %v747, %v744
        %v931 = vpack.c.b16 %v751, %v748
        %v932 = vpack.c.b16 %v752, %v749
        %v933 = vpack.c.b16 %v753, %v750
        %v934 = vpack.c.b16 %v757, %v754
        %v935 = vpack.c.b16 %v758, %v755
        %v936 = vpack.c.b16 %v759, %v756
        %v937 = vpack.c.b16 %v763, %v760
        %v938 = vpack.c.b16 %v764, %v761
        %v939 = vpack.c.b16 %v765, %v762
        %v940 = vpack.c.b16 %v769, %v766
        %v941 = vpack.c.b16 %v770, %v767
        %v942 = vpack.c.b16 %v771, %v768
        %v943 = vpack.c.b16 %v775, %v772
        %v944 = vpack.c.b16 %v776, %v773
        %v945 = vpack.c.b16 %v777, %v774
        %v946 = vpack.c.b16 %v781, %v778
        %v947 = vpack.c.b16 %v782, %v779
        %v948 = vpack.c.b16 %v783, %v780
        %v949 = vpack.c.b16 %v787, %v784
        %v950 = vpack.c.b16 %v788, %v785
        %v951 = vpack.c.b16 %v789, %v786
        %v952 = vpack.c.b16 %v793, %v790
        %v953 = vpack.c.b16 %v794, %v791
        %v954 = vpack.c.b16 %v795, %v792
        %v955 = vpack.c.b16 %v799, %v796
        %v956 = vpack.c.b16 %v800, %v797
        %v957 = vpack.c.b16 %v801, %v798
        %v958 = vpack.c.b16 %v805, %v802
        %v959 = vpack.c.b16 %v806, %v803
        %v960 = vpack.c.b16 %v807, %v804
        %v961 = vpack.c.b16 %v811, %v808
        %v962 = vpack.c.b16 %v812, %v809
        %v963 = vpack.c.b16 %v813, %v810
        %v964 = vpack.c.b16 %v817, %v814
        %v965 = vpack.c.b16 %v818, %v815
        %v966 = vpack.c.b16 %v819, %v816
        %v967 = vpack.c.b16 %v823, %v820
        %v968 = vpack.c.b16 %v824, %v821
        %v969 = vpack.c.b16 %v825, %v822
        %v970 = vpack.c.b16 %v829, %v826
        %v971 = vpack.c.b16 %v830, %v827
        %v972 = vpack.c.b16 %v831, %v828
        %v973 = vpack.c.b16 %v835, %v832
        %v974 = vpack.c.b16 %v836, %v833
        %v975 = vpack.c.b16 %v837, %v834
        %v976 = vpack.c.b16 %v841, %v838
        %v977 = vpack.c.b16 %v842, %v839
        %v978 = vpack.c.b16 %v843, %v840
        %v979 = vpack.c.b16 %v847, %v844
        %v980 = vpack.c.b16 %v848, %v845
        %v981 = vpack.c.b16 %v849, %v846
        %v982 = vpack.c.b16 %v853, %v850
        %v983 = vpack.c.b16 %v854, %v851
        %v984 = vpack.c.b16 %v855, %v852
        %v985 = vpack.c.b16 %v859, %v856
        %v986 = vpack.c.b16 %v860, %v857
        %v987 = vpack.c.b16 %v861, %v858
        %v988 = vpack.c.b16 %v865, %v862
        %v989 = vpack.c.b16 %v866, %v863
        %v990 = vpack.c.b16 %v867, %v864
        %v991 = vpack.c.b16 %v871, %v868
        %v992 = vpack.c.b16 %v872, %v869
        %v993 = vpack.c.b16 %v873, %v870
        %v994 = vpack.c.b16 %v877, %v874
        %v995 = vpack.c.b16 %v878, %v875
        %v996 = vpack.c.b16 %v879, %v876
        %v997 = vpack.c.b16 %v883, %v880
        %v998 = vpack.c.b16 %v884, %v881
        %v999 = vpack.c.b16 %v885, %v882
        %v1000 = vpack.c.b16 %v889, %v886
        %v1001 = vpack.c.b16 %v890, %v887
        %v1002 = vpack.c.b16 %v891, %v888
        %v1003 = vpack.c.b16 %v895, %v892
        %v1004 = vpack.c.b16 %v896, %v893
        %v1005 = vpack.c.b16 %v897, %v894
        %v1006 = vpack.c.b16 %v901, %v898
        %v1007 = vpack.c.b16 %v902, %v899
        %v1008 = vpack.c.b16 %v903, %v900
        %v1009 = vpack.c.b16 %v907, %v904
        %v1010 = vpack.c.b16 %v908, %v905
        %v1011 = vpack.c.b16 %v909, %v906
        %v1012 = vpack.c.b16 %v913, %v910
        %v1013 = vpack.c.b16 %v914, %v911
        %v1014 = vpack.c.b16 %v915, %v912
        %v1015 = vpack.c.b16 %v919, %v916
        %v1016 = vpack.c.b16 %v920, %v917
        %v1017 = vpack.c.b16 %v921, %v918
        %1114 = vmatprep.subr.bf16.mxu0 %v923
        %1115 = vmatpush1.bf16.msra.mxu0 %v922
        %1116 = vmatprep.subr.bf16.mxu0 %v926
        %1117 = vmatpush1.bf16.msra.mxu0 %v925
        %1118 = vmatprep.subr.bf16.mxu0 %v929
        %1119 = vmatpush1.bf16.msra.mxu0 %v928
        %1120 = vmatprep.subr.bf16.mxu0 %v932
        %1121 = vmatpush1.bf16.msra.mxu0 %v931
        %1122 = vmatprep.subr.bf16.mxu0 %v935
        %1123 = vmatpush1.bf16.msra.mxu0 %v934
        %1124 = vmatprep.subr.bf16.mxu0 %v938
        %1125 = vmatpush1.bf16.msra.mxu0 %v937
        %1126 = vmatprep.subr.bf16.mxu0 %v941
        %1127 = vmatpush1.bf16.msra.mxu0 %v940
        %1128 = vmatprep.subr.bf16.mxu0 %v944
        %1129 = vmatpush1.bf16.msra.mxu0 %v943
        %1130 = vmatprep.subr.bf16.mxu0 %v947
        %1131 = vmatpush1.bf16.msra.mxu0 %v946
        %1132 = vmatprep.subr.bf16.mxu0 %v950
        %1133 = vmatpush1.bf16.msra.mxu0 %v949
        %1134 = vmatprep.subr.bf16.mxu0 %v953
        %1135 = vmatpush1.bf16.msra.mxu0 %v952
        %1136 = vmatprep.subr.bf16.mxu0 %v956
        %1137 = vmatpush1.bf16.msra.mxu0 %v955
        %1138 = vmatprep.subr.bf16.mxu0 %v959
        %1139 = vmatpush1.bf16.msra.mxu0 %v958
        %1140 = vmatprep.subr.bf16.mxu0 %v962
        %1141 = vmatpush1.bf16.msra.mxu0 %v961
        %1142 = vmatprep.subr.bf16.mxu0 %v965
        %1143 = vmatpush1.bf16.msra.mxu0 %v964
        %1144 = vmatprep.subr.bf16.mxu0 %v968
        %1145 = vmatpush1.bf16.msra.mxu0 %v967
        %1146 = vmatprep.mubr.bf16.mxu0 %v595
        %1147 = vmatmul.mubr.bf16.gmra.mrb[0].mxu0 %v594
        %v1148 = vpop.f32.mrb[0].mxu0
        %v1149 = vadd.f32 0.0, %v1148
        %v1150 = vpop.f32.mrb[0].mxu0
        %v1151 = vadd.f32 0.0, %v1150
        %v1152 = vpop.f32.mrb[0].mxu0
        %v1153 = vadd.f32 0.0, %v1152
        %v1154 = vpop.f32.mrb[0].mxu0
        %v1155 = vadd.f32 0.0, %v1154
        %1156 = vdwg.mxu0
        %1157 = vmatprep.subr.bf16.mxu0 %v971
        %1158 = vmatpush1.bf16.msra.mxu0 %v970
        %1159 = vmatprep.subr.bf16.mxu0 %v974
        %1160 = vmatpush1.bf16.msra.mxu0 %v973
        %1161 = vmatprep.subr.bf16.mxu0 %v977
        %1162 = vmatpush1.bf16.msra.mxu0 %v976
        %1163 = vmatprep.subr.bf16.mxu0 %v980
        %1164 = vmatpush1.bf16.msra.mxu0 %v979
        %1165 = vmatprep.subr.bf16.mxu0 %v983
        %1166 = vmatpush1.bf16.msra.mxu0 %v982
        %1167 = vmatprep.subr.bf16.mxu0 %v986
        %1168 = vmatpush1.bf16.msra.mxu0 %v985
        %1169 = vmatprep.subr.bf16.mxu0 %v989
        %1170 = vmatpush1.bf16.msra.mxu0 %v988
        %1171 = vmatprep.subr.bf16.mxu0 %v992
        %1172 = vmatpush1.bf16.msra.mxu0 %v991
        %1173 = vmatprep.subr.bf16.mxu0 %v995
        %1174 = vmatpush1.bf16.msra.mxu0 %v994
        %1175 = vmatprep.subr.bf16.mxu0 %v998
        %1176 = vmatpush1.bf16.msra.mxu0 %v997
        %1177 = vmatprep.subr.bf16.mxu0 %v1001
        %1178 = vmatpush1.bf16.msra.mxu0 %v1000
        %1179 = vmatprep.subr.bf16.mxu0 %v1004
        %1180 = vmatpush1.bf16.msra.mxu0 %v1003
        %1181 = vmatprep.subr.bf16.mxu0 %v1007
        %1182 = vmatpush1.bf16.msra.mxu0 %v1006
        %1183 = vmatprep.subr.bf16.mxu0 %v1010
        %1184 = vmatpush1.bf16.msra.mxu0 %v1009
        %1185 = vmatprep.subr.bf16.mxu0 %v1013
        %1186 = vmatpush1.bf16.msra.mxu0 %v1012
        %1187 = vmatprep.subr.bf16.mxu0 %v1016
        %1188 = vmatpush1.bf16.msra.mxu0 %v1015
        %1189 = vmatprep.mubr.bf16.mxu0 %v597
        %1190 = vmatmul.mubr.bf16.gmra.mrb[0].mxu0 %v596
        %v1191 = vpop.f32.mrb[0].mxu0
        %v1192 = vadd.f32 %v1149, %v1191
        %v1193 = vpop.f32.mrb[0].mxu0
        %v1194 = vadd.f32 %v1151, %v1193
        %v1195 = vpop.f32.mrb[0].mxu0
        %v1196 = vadd.f32 %v1153, %v1195
        %v1197 = vpop.f32.mrb[0].mxu0
        %v1198 = vadd.f32 %v1155, %v1197
        %1199 = vdwg.mxu0
        %1200 = vmatprep.subr.bf16.mxu0 0
        %1201 = vmatpush1.bf16.msra.mxu0 %v924
        %1202 = vmatprep.subr.bf16.mxu0 0
        %1203 = vmatpush1.bf16.msra.mxu0 %v927
        %1204 = vmatprep.subr.bf16.mxu0 0
        %1205 = vmatpush1.bf16.msra.mxu0 %v930
        %1206 = vmatprep.subr.bf16.mxu0 0
        %1207 = vmatpush1.bf16.msra.mxu0 %v933
        %1208 = vmatprep.subr.bf16.mxu0 0
        %1209 = vmatpush1.bf16.msra.mxu0 %v936
        %1210 = vmatprep.subr.bf16.mxu0 0
        %1211 = vmatpush1.bf16.msra.mxu0 %v939
        %1212 = vmatprep.subr.bf16.mxu0 0
        %1213 = vmatpush1.bf16.msra.mxu0 %v942
        %1214 = vmatprep.subr.bf16.mxu0 0
        %1215 = vmatpush1.bf16.msra.mxu0 %v945
        %1216 = vmatprep.subr.bf16.mxu0 0
        %1217 = vmatpush1.bf16.msra.mxu0 %v948
        %1218 = vmatprep.subr.bf16.mxu0 0
        %1219 = vmatpush1.bf16.msra.mxu0 %v951
        %1220 = vmatprep.subr.bf16.mxu0 0
        %1221 = vmatpush1.bf16.msra.mxu0 %v954
        %1222 = vmatprep.subr.bf16.mxu0 0
        %1223 = vmatpush1.bf16.msra.mxu0 %v957
        %1224 = vmatprep.subr.bf16.mxu0 0
        %1225 = vmatpush1.bf16.msra.mxu0 %v960
        %1226 = vmatprep.subr.bf16.mxu0 0
        %1227 = vmatpush1.bf16.msra.mxu0 %v963
        %1228 = vmatprep.subr.bf16.mxu0 0
        %1229 = vmatpush1.bf16.msra.mxu0 %v966
        %1230 = vmatprep.subr.bf16.mxu0 0
        %1231 = vmatpush1.bf16.msra.mxu0 %v969
        %1232 = vmatprep.mubr.bf16.mxu0 %v595
        %1233 = vmatmul.mubr.bf16.gmra.mrb[0].mxu0 %v594
        %v1234 = vpop.f32.mrb[0].mxu0
        %v1235 = vadd.f32 0.0, %v1234
        %v1236 = vpop.f32.mrb[0].mxu0
        %v1237 = vpop.f32.mrb[0].mxu0
        %v1238 = vadd.f32 0.0, %v1237
        %v1239 = vpop.f32.mrb[0].mxu0
        %1240 = vdwg.mxu0
        %1241 = vmatprep.subr.bf16.mxu0 0
        %1242 = vmatpush1.bf16.msra.mxu0 %v972
        %1243 = vmatprep.subr.bf16.mxu0 0
        %1244 = vmatpush1.bf16.msra.mxu0 %v975
        %1245 = vmatprep.subr.bf16.mxu0 0
        %1246 = vmatpush1.bf16.msra.mxu0 %v978
        %1247 = vmatprep.subr.bf16.mxu0 0
        %1248 = vmatpush1.bf16.msra.mxu0 %v981
        %1249 = vmatprep.subr.bf16.mxu0 0
        %1250 = vmatpush1.bf16.msra.mxu0 %v984
        %1251 = vmatprep.subr.bf16.mxu0 0
        %1252 = vmatpush1.bf16.msra.mxu0 %v987
        %1253 = vmatprep.subr.bf16.mxu0 0
        %1254 = vmatpush1.bf16.msra.mxu0 %v990
        %1255 = vmatprep.subr.bf16.mxu0 0
        %1256 = vmatpush1.bf16.msra.mxu0 %v993
        %1257 = vmatprep.subr.bf16.mxu0 0
        %1258 = vmatpush1.bf16.msra.mxu0 %v996
        %1259 = vmatprep.subr.bf16.mxu0 0
        %1260 = vmatpush1.bf16.msra.mxu0 %v999
        %1261 = vmatprep.subr.bf16.mxu0 0
        %1262 = vmatpush1.bf16.msra.mxu0 %v1002
        %1263 = vmatprep.subr.bf16.mxu0 0
        %1264 = vmatpush1.bf16.msra.mxu0 %v1005
        %1265 = vmatprep.subr.bf16.mxu0 0
        %1266 = vmatpush1.bf16.msra.mxu0 %v1008
        %1267 = vmatprep.subr.bf16.mxu0 0
        %1268 = vmatpush1.bf16.msra.mxu0 %v1011
        %1269 = vmatprep.subr.bf16.mxu0 0
        %1270 = vmatpush1.bf16.msra.mxu0 %v1014
        %1271 = vmatprep.subr.bf16.mxu0 0
        %1272 = vmatpush1.bf16.msra.mxu0 %v1017
        %1273 = vmatprep.mubr.bf16.mxu0 %v597
        %1274 = vmatmul.mubr.bf16.gmra.mrb[0].mxu0 %v596
        %v1275 = vpop.f32.mrb[0].mxu0
        %v1276 = vadd.f32 %v1235, %v1275
        %v1277 = vpop.f32.mrb[0].mxu0
        %v1278 = vpop.f32.mrb[0].mxu0
        %v1279 = vadd.f32 %v1238, %v1278
        %v1280 = vpop.f32.mrb[0].mxu0
        %1281 = vdwg.mxu0
        %v1282 = vadd.f32 %v444, %v1192
        %v1283 = vadd.f32 %v445, %v1194
        %v1284 = vadd.f32 %v446, %v1276
        %v1285 = vadd.f32 %v447, %v1196
        %v1286 = vadd.f32 %v448, %v1198
        %v1287 = vadd.f32 %v449, %v1279
        %1288 = vst [vmem:[#allocation2] sm:$0xff] %v1282
        %1289 = vst [vmem:[#allocation2 + $0x8] sm:$0xff] %v1283
        %1290 = vst [vmem:[#allocation2 + $0x10] sm:$0xff] %v1284
        %1291 = vst [vmem:[#allocation2 + $0x18] sm:$0xff] %v1285
        %1292 = vst [vmem:[#allocation2 + $0x20] sm:$0xff] %v1286
        %1293 = vst [vmem:[#allocation2 + $0x28] sm:$0xff] %v1287
        %p1294 = scmp.eq.s32.totalorder %s28, 1
        // Predicated region
        $region88: #{combined_transfer_forward.1} parent=78 // pred_check
          %p1295 = pneg %p1294
        $region89: #{combined_transfer_forward.1} parent=78 // pred_check_branch
          %1297 = sbr.rel (%p1295) target = $region91
        $region90: #{combined_transfer_forward.1} parent=78 // pred_region
          %v1298 = vld [vmem:[#allocation2] sm:$0xff]
          %v1299 = vld [vmem:[#allocation2 + $0x8] sm:$0xff]
          %v1300 = vld [vmem:[#allocation2 + $0x10] sm:$0xff]
          %v1301 = vld [vmem:[#allocation2 + $0x18] sm:$0xff]
          %v1302 = vld [vmem:[#allocation2 + $0x20] sm:$0xff]
          %v1303 = vld [vmem:[#allocation2 + $0x28] sm:$0xff]
          %v1304 = vld [vmem:[%s2] sm:$0x7]
          %v1306 = vlaneseq
          %v1307 = vshrl.u32 %v1306, 7
          %v1308 = vsub.s32 0, %v1307
          %v1309 = vrot.slane %v1304, %v1308
          %v1310 = vlaneseq
          %v1311 = vshrl.u32 %v1310, 7
          %v1312 = vsub.s32 1, %v1311
          %v1313 = vrot.slane %v1304, %v1312
          %v1314 = vlaneseq
          %v1315 = vshrl.u32 %v1314, 7
          %v1316 = vsub.s32 2, %v1315
          %v1317 = vrot.slane %v1304, %v1316
          %v1321 = vadd.f32 %v1298, %v1309
          %v1322 = vadd.f32 %v1299, %v1313
          %v1323 = vadd.f32 %v1300, %v1317
          %v1324 = vadd.f32 %v1301, %v1309
          %v1325 = vadd.f32 %v1302, %v1313
          %v1326 = vadd.f32 %v1303, %v1317
          %v1327 = vmul.f32 %v1321, %v1321
          %v1328 = vmul.f32 %v1322, %v1322
          %v1329 = vmul.f32 %v1324, %v1324
          %v1330 = vmul.f32 %v1325, %v1325
          %v1331 = vadd.f32 %v1327, %v1328
          %1332 = vadd.xlane.f32.xlu0 %v1331
          %v1333 = vpop.xlane.xlu0 %1332
          %v1334 = vadd.f32 %v1329, %v1330
          %1335 = vadd.xlane.f32.xlu0 %v1334
          %v1336 = vpop.xlane.xlu0 %1335
          %v1337 = vrsqrt.pop %v1333
          %v1338 = vmul.f32 %v1333, %v1337
          %vm1339 = vcmp.eq.f32.partialorder %v1333, inf
          %v1340 = vsel %vm1339, %v1333, %v1338
          %vm1341 = vcmp.eq.f32.partialorder %v1333, 0.0
          %v1342 = vand.u32 %v1333, 2147483648
          %v1343 = vsel %vm1341, %v1342, %v1340
          %v1344 = vrsqrt.pop %v1336
          %v1345 = vmul.f32 %v1336, %v1344
          %vm1346 = vcmp.eq.f32.partialorder %v1336, inf
          %v1347 = vsel %vm1346, %v1336, %v1345
          %vm1348 = vcmp.eq.f32.partialorder %v1336, 0.0
          %v1349 = vand.u32 %v1336, 2147483648
          %v1350 = vsel %vm1348, %v1349, %v1347
          %v1351 = vmul.f32 %v1323, %v1323
          %v1352 = vmul.f32 %v1326, %v1326
          %1353 = vadd.xlane.f32.xlu0 %v1351
          %v1354 = vpop.xlane.xlu0 %1353
          %1355 = vadd.xlane.f32.xlu0 %v1352
          %v1356 = vpop.xlane.xlu0 %1355
          %v1357 = vrsqrt.pop %v1354
          %v1358 = vmul.f32 %v1354, %v1357
          %vm1359 = vcmp.eq.f32.partialorder %v1354, inf
          %v1360 = vsel %vm1359, %v1354, %v1358
          %vm1361 = vcmp.eq.f32.partialorder %v1354, 0.0
          %v1362 = vand.u32 %v1354, 2147483648
          %v1363 = vsel %vm1361, %v1362, %v1360
          %v1364 = vrsqrt.pop %v1356
          %v1365 = vmul.f32 %v1356, %v1364
          %vm1366 = vcmp.eq.f32.partialorder %v1356, inf
          %v1367 = vsel %vm1366, %v1356, %v1365
          %vm1368 = vcmp.eq.f32.partialorder %v1356, 0.0
          %v1369 = vand.u32 %v1356, 2147483648
          %v1370 = vsel %vm1368, %v1369, %v1367
          %v1371 = vadd.f32 %v1343, 1e-08
          %v1372 = vadd.f32 %v1350, 1e-08
          %v1373 = vrcp.pop %v1371
          %v1374 = vmul.f32 0.8, %v1373
          %v1375 = vrcp.pop %v1372
          %v1376 = vmul.f32 0.8, %v1375
          %v1377 = vmul.f32 %v1321, %v1374
          %v1378 = vmul.f32 %v1322, %v1374
          %v1379 = vmul.f32 %v1324, %v1376
          %v1380 = vmul.f32 %v1325, %v1376
          %v1381 = vadd.f32 %v1363, 1e-08
          %v1382 = vadd.f32 %v1370, 1e-08
          %v1383 = vrcp.pop %v1381
          %v1384 = vmul.f32 1.2, %v1383
          %v1385 = vrcp.pop %v1382
          %v1386 = vmul.f32 1.2, %v1385
          %v1387 = vmul.f32 %v1323, %v1384
          %v1388 = vmul.f32 %v1326, %v1386
          %v1389 = vld [vmem:[%s3] sm:$0xff]
          %v1390 = vld [vmem:[%s3 + $0x8] sm:$0xff]
          %v1391 = vld [vmem:[%s3 + $0x10] sm:$0xff]
          %v1392 = vld [vmem:[%s3 + $0x18] sm:$0xff]
          %v1393 = vld [vmem:[%s3 + $0x20] sm:$0xff]
          %v1394 = vld [vmem:[%s3 + $0x28] sm:$0xff]
          %v1395 = vld [vmem:[%s3 + $0x30] sm:$0xff]
          %v1396 = vld [vmem:[%s3 + $0x38] sm:$0xff]
          %v1397 = vld [vmem:[%s3 + $0x40] sm:$0xff]
          %v1398 = vld [vmem:[%s3 + $0x48] sm:$0xff]
          %v1399 = vld [vmem:[%s3 + $0x50] sm:$0xff]
          %v1400 = vld [vmem:[%s3 + $0x58] sm:$0xff]
          %v1401 = vld [vmem:[%s3 + $0x60] sm:$0xff]
          %v1402 = vld [vmem:[%s3 + $0x68] sm:$0xff]
          %v1403 = vld [vmem:[%s3 + $0x70] sm:$0xff]
          %v1404 = vld [vmem:[%s3 + $0x78] sm:$0xff]
          %v1405 = vld [vmem:[%s3 + $0x80] sm:$0xff]
          %v1406 = vld [vmem:[%s3 + $0x88] sm:$0xff]
          %v1407 = vld [vmem:[%s3 + $0x90] sm:$0xff]
          %v1408 = vld [vmem:[%s3 + $0x98] sm:$0xff]
          %v1409 = vld [vmem:[%s3 + $0xa0] sm:$0xff]
          %v1410 = vld [vmem:[%s3 + $0xa8] sm:$0xff]
          %v1411 = vld [vmem:[%s3 + $0xb0] sm:$0xff]
          %v1412 = vld [vmem:[%s3 + $0xb8] sm:$0xff]
          %v1413 = vld [vmem:[%s3 + $0xc0] sm:$0xff]
          %v1414 = vld [vmem:[%s3 + $0xc8] sm:$0xff]
          %v1415 = vld [vmem:[%s3 + $0xd0] sm:$0xff]
          %v1416 = vld [vmem:[%s3 + $0xd8] sm:$0xff]
          %v1417 = vld [vmem:[%s3 + $0xe0] sm:$0xff]
          %v1418 = vld [vmem:[%s3 + $0xe8] sm:$0xff]
          %v1419 = vld [vmem:[%s3 + $0xf0] sm:$0xff]
          %v1420 = vld [vmem:[%s3 + $0xf8] sm:$0xff]
          %v1421 = vld [vmem:[%s3 + $0x100] sm:$0xff]
          %v1422 = vld [vmem:[%s3 + $0x108] sm:$0xff]
          %v1423 = vld [vmem:[%s3 + $0x110] sm:$0xff]
          %v1424 = vld [vmem:[%s3 + $0x118] sm:$0xff]
          %v1425 = vld [vmem:[%s3 + $0x120] sm:$0xff]
          %v1426 = vld [vmem:[%s3 + $0x128] sm:$0xff]
          %v1427 = vld [vmem:[%s3 + $0x130] sm:$0xff]
          %v1428 = vld [vmem:[%s3 + $0x138] sm:$0xff]
          %v1429 = vld [vmem:[%s3 + $0x140] sm:$0xff]
          %v1430 = vld [vmem:[%s3 + $0x148] sm:$0xff]
          %v1431 = vld [vmem:[%s3 + $0x150] sm:$0xff]
          %v1432 = vld [vmem:[%s3 + $0x158] sm:$0xff]
          %v1433 = vld [vmem:[%s3 + $0x160] sm:$0xff]
          %v1434 = vld [vmem:[%s3 + $0x168] sm:$0xff]
          %v1435 = vld [vmem:[%s3 + $0x170] sm:$0xff]
          %v1436 = vld [vmem:[%s3 + $0x178] sm:$0xff]
          %v1437 = vld [vmem:[%s3 + $0x180] sm:$0xff]
          %v1438 = vld [vmem:[%s3 + $0x188] sm:$0xff]
          %v1439 = vld [vmem:[%s3 + $0x190] sm:$0xff]
          %v1440 = vld [vmem:[%s3 + $0x198] sm:$0xff]
          %v1441 = vld [vmem:[%s3 + $0x1a0] sm:$0xff]
          %v1442 = vld [vmem:[%s3 + $0x1a8] sm:$0xff]
          %v1443 = vld [vmem:[%s3 + $0x1b0] sm:$0xff]
          %v1444 = vld [vmem:[%s3 + $0x1b8] sm:$0xff]
          %v1445 = vld [vmem:[%s3 + $0x1c0] sm:$0xff]
          %v1446 = vld [vmem:[%s3 + $0x1c8] sm:$0xff]
          %v1447 = vld [vmem:[%s3 + $0x1d0] sm:$0xff]
          %v1448 = vld [vmem:[%s3 + $0x1d8] sm:$0xff]
          %v1449 = vld [vmem:[%s3 + $0x1e0] sm:$0xff]
          %v1450 = vld [vmem:[%s3 + $0x1e8] sm:$0xff]
          %v1451 = vld [vmem:[%s3 + $0x1f0] sm:$0xff]
          %v1452 = vld [vmem:[%s3 + $0x1f8] sm:$0xff]
          %v1453 = vld [vmem:[%s4] sm:$0xff]
          %v1454 = vld [vmem:[%s4 + $0x8] sm:$0xff]
          %v1455 = vld [vmem:[%s4 + $0x10] sm:$0xff]
          %v1456 = vld [vmem:[%s4 + $0x18] sm:$0xff]
          %v1457 = vld [vmem:[%s4 + $0x20] sm:$0xff]
          %v1458 = vld [vmem:[%s4 + $0x28] sm:$0xff]
          %v1459 = vld [vmem:[%s4 + $0x30] sm:$0xff]
          %v1460 = vld [vmem:[%s4 + $0x38] sm:$0xff]
          %v1461 = vld [vmem:[%s4 + $0x40] sm:$0xff]
          %v1462 = vld [vmem:[%s4 + $0x48] sm:$0xff]
          %v1463 = vld [vmem:[%s4 + $0x50] sm:$0xff]
          %v1464 = vld [vmem:[%s4 + $0x58] sm:$0xff]
          %v1465 = vld [vmem:[%s4 + $0x60] sm:$0xff]
          %v1466 = vld [vmem:[%s4 + $0x68] sm:$0xff]
          %v1467 = vld [vmem:[%s4 + $0x70] sm:$0xff]
          %v1468 = vld [vmem:[%s4 + $0x78] sm:$0xff]
          %v1469 = vld [vmem:[%s4 + $0x80] sm:$0xff]
          %v1470 = vld [vmem:[%s4 + $0x88] sm:$0xff]
          %v1471 = vld [vmem:[%s4 + $0x90] sm:$0xff]
          %v1472 = vld [vmem:[%s4 + $0x98] sm:$0xff]
          %v1473 = vld [vmem:[%s4 + $0xa0] sm:$0xff]
          %v1474 = vld [vmem:[%s4 + $0xa8] sm:$0xff]
          %v1475 = vld [vmem:[%s4 + $0xb0] sm:$0xff]
          %v1476 = vld [vmem:[%s4 + $0xb8] sm:$0xff]
          %v1477 = vld [vmem:[%s4 + $0xc0] sm:$0xff]
          %v1478 = vld [vmem:[%s4 + $0xc8] sm:$0xff]
          %v1479 = vld [vmem:[%s4 + $0xd0] sm:$0xff]
          %v1480 = vld [vmem:[%s4 + $0xd8] sm:$0xff]
          %v1481 = vld [vmem:[%s4 + $0xe0] sm:$0xff]
          %v1482 = vld [vmem:[%s4 + $0xe8] sm:$0xff]
          %v1483 = vld [vmem:[%s4 + $0xf0] sm:$0xff]
          %v1484 = vld [vmem:[%s4 + $0xf8] sm:$0xff]
          %1485 = vmatprep.subr.mxu0 %v1454
          %1486 = vmatpush1.msra.mxu0 %v1453
          %1487 = vmatprep.subr.mxu0 %v1456
          %1488 = vmatpush1.msra.mxu0 %v1455
          %1489 = vmatprep.subr.mxu0 %v1458
          %1490 = vmatpush1.msra.mxu0 %v1457
          %1491 = vmatprep.subr.mxu0 %v1460
          %1492 = vmatpush1.msra.mxu0 %v1459
          %1493 = vmatprep.subr.mxu0 %v1462
          %1494 = vmatpush1.msra.mxu0 %v1461
          %1495 = vmatprep.subr.mxu0 %v1464
          %1496 = vmatpush1.msra.mxu0 %v1463
          %1497 = vmatprep.subr.mxu0 %v1466
          %1498 = vmatpush1.msra.mxu0 %v1465
          %1499 = vmatprep.subr.mxu0 %v1468
          %1500 = vmatpush1.msra.mxu0 %v1467
          %1501 = vmatprep.subr.mxu0 %v1470
          %1502 = vmatpush1.msra.mxu0 %v1469
          %1503 = vmatprep.subr.mxu0 %v1472
          %1504 = vmatpush1.msra.mxu0 %v1471
          %1505 = vmatprep.subr.mxu0 %v1474
          %1506 = vmatpush1.msra.mxu0 %v1473
          %1507 = vmatprep.subr.mxu0 %v1476
          %1508 = vmatpush1.msra.mxu0 %v1475
          %1509 = vmatprep.subr.mxu0 %v1478
          %1510 = vmatpush1.msra.mxu0 %v1477
          %1511 = vmatprep.subr.mxu0 %v1480
          %1512 = vmatpush1.msra.mxu0 %v1479
          %1513 = vmatprep.subr.mxu0 %v1482
          %1514 = vmatpush1.msra.mxu0 %v1481
          %1515 = vmatprep.subr.mxu0 %v1484
          %1516 = vmatpush1.msra.mxu0 %v1483
          %1517 = vmatprep.subr.mxu0 0.0
          %1518 = vmatpush1.msra.mxu0 0.0
          %1519 = vmatprep.subr.mxu0 0.0
          %1520 = vmatpush1.msra.mxu0 0.0
          %1521 = vmatprep.subr.mxu0 0.0
          %1522 = vmatpush1.msra.mxu0 0.0
          %1523 = vmatprep.subr.mxu0 0.0
          %1524 = vmatpush1.msra.mxu0 0.0
          %1525 = vmatprep.subr.mxu0 0.0
          %1526 = vmatpush1.msra.mxu0 0.0
          %1527 = vmatprep.subr.mxu0 0.0
          %1528 = vmatpush1.msra.mxu0 0.0
          %1529 = vmatprep.subr.mxu0 0.0
          %1530 = vmatpush1.msra.mxu0 0.0
          %1531 = vmatprep.subr.mxu0 0.0
          %1532 = vmatpush1.msra.mxu0 0.0
          %1533 = vmatprep.subr.mxu0 0.0
          %1534 = vmatpush1.msra.mxu0 0.0
          %1535 = vmatprep.subr.mxu0 0.0
          %1536 = vmatpush1.msra.mxu0 0.0
          %1537 = vmatprep.subr.mxu0 0.0
          %1538 = vmatpush1.msra.mxu0 0.0
          %1539 = vmatprep.subr.mxu0 0.0
          %1540 = vmatpush1.msra.mxu0 0.0
          %1541 = vmatprep.subr.mxu0 0.0
          %1542 = vmatpush1.msra.mxu0 0.0
          %1543 = vmatprep.subr.mxu0 0.0
          %1544 = vmatpush1.msra.mxu0 0.0
          %1545 = vmatprep.subr.mxu0 0.0
          %1546 = vmatpush1.msra.mxu0 0.0
          %1547 = vmatprep.subr.mxu0 0.0
          %1548 = vmatpush1.msra.mxu0 0.0
          %1549 = vmatprep.mubr.f32.mxu0 0.0
          %1550 = vmatmul.mubr.f32.gmra.mrb[0].mxu0 %v1387
          %v1551 = vpop.f32.mrb[0].mxu0
          %v1552 = vadd.f32 0.0, %v1551
          %v1553 = vpop.f32.mrb[0].mxu0
          %v1554 = vadd.f32 0.0, %v1553
          %1555 = vmatprep.mubr.f32.mxu0 0.0
          %1556 = vmatmul.mubr.f32.gmra.mrb[0].mxu0 %v1388
          %v1557 = vpop.f32.mrb[0].mxu0
          %v1558 = vadd.f32 0.0, %v1557
          %v1559 = vpop.f32.mrb[0].mxu0
          %v1560 = vadd.f32 0.0, %v1559
          %1561 = vdwg.mxu0
          %1562 = vmatprep.subr.mxu0 %v1390
          %1563 = vmatpush1.msra.mxu0 %v1389
          %1564 = vmatprep.subr.mxu0 %v1392
          %1565 = vmatpush1.msra.mxu0 %v1391
          %1566 = vmatprep.subr.mxu0 %v1394
          %1567 = vmatpush1.msra.mxu0 %v1393
          %1568 = vmatprep.subr.mxu0 %v1396
          %1569 = vmatpush1.msra.mxu0 %v1395
          %1570 = vmatprep.subr.mxu0 %v1398
          %1571 = vmatpush1.msra.mxu0 %v1397
          %1572 = vmatprep.subr.mxu0 %v1400
          %1573 = vmatpush1.msra.mxu0 %v1399
          %1574 = vmatprep.subr.mxu0 %v1402
          %1575 = vmatpush1.msra.mxu0 %v1401
          %1576 = vmatprep.subr.mxu0 %v1404
          %1577 = vmatpush1.msra.mxu0 %v1403
          %1578 = vmatprep.subr.mxu0 %v1406
          %1579 = vmatpush1.msra.mxu0 %v1405
          %1580 = vmatprep.subr.mxu0 %v1408
          %1581 = vmatpush1.msra.mxu0 %v1407
          %1582 = vmatprep.subr.mxu0 %v1410
          %1583 = vmatpush1.msra.mxu0 %v1409
          %1584 = vmatprep.subr.mxu0 %v1412
          %1585 = vmatpush1.msra.mxu0 %v1411
          %1586 = vmatprep.subr.mxu0 %v1414
          %1587 = vmatpush1.msra.mxu0 %v1413
          %1588 = vmatprep.subr.mxu0 %v1416
          %1589 = vmatpush1.msra.mxu0 %v1415
          %1590 = vmatprep.subr.mxu0 %v1418
          %1591 = vmatpush1.msra.mxu0 %v1417
          %1592 = vmatprep.subr.mxu0 %v1420
          %1593 = vmatpush1.msra.mxu0 %v1419
          %1594 = vmatprep.subr.mxu0 %v1422
          %1595 = vmatpush1.msra.mxu0 %v1421
          %1596 = vmatprep.subr.mxu0 %v1424
          %1597 = vmatpush1.msra.mxu0 %v1423
          %1598 = vmatprep.subr.mxu0 %v1426
          %1599 = vmatpush1.msra.mxu0 %v1425
          %1600 = vmatprep.subr.mxu0 %v1428
          %1601 = vmatpush1.msra.mxu0 %v1427
          %1602 = vmatprep.subr.mxu0 %v1430
          %1603 = vmatpush1.msra.mxu0 %v1429
          %1604 = vmatprep.subr.mxu0 %v1432
          %1605 = vmatpush1.msra.mxu0 %v1431
          %1606 = vmatprep.subr.mxu0 %v1434
          %1607 = vmatpush1.msra.mxu0 %v1433
          %1608 = vmatprep.subr.mxu0 %v1436
          %1609 = vmatpush1.msra.mxu0 %v1435
          %1610 = vmatprep.subr.mxu0 %v1438
          %1611 = vmatpush1.msra.mxu0 %v1437
          %1612 = vmatprep.subr.mxu0 %v1440
          %1613 = vmatpush1.msra.mxu0 %v1439
          %1614 = vmatprep.subr.mxu0 %v1442
          %1615 = vmatpush1.msra.mxu0 %v1441
          %1616 = vmatprep.subr.mxu0 %v1444
          %1617 = vmatpush1.msra.mxu0 %v1443
          %1618 = vmatprep.subr.mxu0 %v1446
          %1619 = vmatpush1.msra.mxu0 %v1445
          %1620 = vmatprep.subr.mxu0 %v1448
          %1621 = vmatpush1.msra.mxu0 %v1447
          %1622 = vmatprep.subr.mxu0 %v1450
          %1623 = vmatpush1.msra.mxu0 %v1449
          %1624 = vmatprep.subr.mxu0 %v1452
          %1625 = vmatpush1.msra.mxu0 %v1451
          %1626 = vmatprep.mubr.f32.mxu0 %v1378
          %1627 = vmatmul.mubr.f32.gmra.mrb[0].mxu0 %v1377
          %v1628 = vpop.f32.mrb[0].mxu0
          %v1629 = vadd.f32 %v1552, %v1628
          %v1630 = vpop.f32.mrb[0].mxu0
          %v1631 = vadd.f32 %v1554, %v1630
          %1632 = vmatprep.mubr.f32.mxu0 %v1380
          %1633 = vmatmul.mubr.f32.gmra.mrb[0].mxu0 %v1379
          %v1634 = vpop.f32.mrb[0].mxu0
          %v1635 = vadd.f32 %v1558, %v1634
          %v1636 = vpop.f32.mrb[0].mxu0
          %v1637 = vadd.f32 %v1560, %v1636
          %1638 = vdwg.mxu0
          %v1639 = vld [vmem:[%s5] sm:$0x3]
          %v1641 = vlaneseq
          %v1642 = vshrl.u32 %v1641, 7
          %v1643 = vsub.s32 0, %v1642
          %v1644 = vrot.slane %v1639, %v1643
          %v1645 = vlaneseq
          %v1646 = vshrl.u32 %v1645, 7
          %v1647 = vsub.s32 1, %v1646
          %v1648 = vrot.slane %v1639, %v1647
          %v1651 = vadd.f32 %v1629, %v1644
          %v1652 = vadd.f32 %v1631, %v1648
          %v1653 = vadd.f32 %v1635, %v1644
          %v1654 = vadd.f32 %v1637, %v1648
          %v1655 = vmax.f32 %v1651, 0.0
          %v1656 = vmax.f32 %v1652, 0.0
          %v1657 = vmax.f32 %v1653, 0.0
          %v1658 = vmax.f32 %v1654, 0.0
          %v1659 = vld [vmem:[%s6] sm:$0xff]
          %v1660 = vld [vmem:[%s6 + $0x8] sm:$0xff]
          %v1661 = vld [vmem:[%s6 + $0x10] sm:$0xff]
          %v1662 = vld [vmem:[%s6 + $0x18] sm:$0xff]
          %v1663 = vld [vmem:[%s6 + $0x20] sm:$0xff]
          %v1664 = vld [vmem:[%s6 + $0x28] sm:$0xff]
          %v1665 = vld [vmem:[%s6 + $0x30] sm:$0xff]
          %v1666 = vld [vmem:[%s6 + $0x38] sm:$0xff]
          %v1667 = vld [vmem:[%s6 + $0x40] sm:$0xff]
          %v1668 = vld [vmem:[%s6 + $0x48] sm:$0xff]
          %v1669 = vld [vmem:[%s6 + $0x50] sm:$0xff]
          %v1670 = vld [vmem:[%s6 + $0x58] sm:$0xff]
          %v1671 = vld [vmem:[%s6 + $0x60] sm:$0xff]
          %v1672 = vld [vmem:[%s6 + $0x68] sm:$0xff]
          %v1673 = vld [vmem:[%s6 + $0x70] sm:$0xff]
          %v1674 = vld [vmem:[%s6 + $0x78] sm:$0xff]
          %v1675 = vld [vmem:[%s6 + $0x80] sm:$0xff]
          %v1676 = vld [vmem:[%s6 + $0x88] sm:$0xff]
          %v1677 = vld [vmem:[%s6 + $0x90] sm:$0xff]
          %v1678 = vld [vmem:[%s6 + $0x98] sm:$0xff]
          %v1679 = vld [vmem:[%s6 + $0xa0] sm:$0xff]
          %v1680 = vld [vmem:[%s6 + $0xa8] sm:$0xff]
          %v1681 = vld [vmem:[%s6 + $0xb0] sm:$0xff]
          %v1682 = vld [vmem:[%s6 + $0xb8] sm:$0xff]
          %v1683 = vld [vmem:[%s6 + $0xc0] sm:$0xff]
          %v1684 = vld [vmem:[%s6 + $0xc8] sm:$0xff]
          %v1685 = vld [vmem:[%s6 + $0xd0] sm:$0xff]
          %v1686 = vld [vmem:[%s6 + $0xd8] sm:$0xff]
          %v1687 = vld [vmem:[%s6 + $0xe0] sm:$0xff]
          %v1688 = vld [vmem:[%s6 + $0xe8] sm:$0xff]
          %v1689 = vld [vmem:[%s6 + $0xf0] sm:$0xff]
          %v1690 = vld [vmem:[%s6 + $0xf8] sm:$0xff]
          %v1691 = vld [vmem:[%s7] sm:$0x1]
          %v1693 = vlaneseq
          %v1694 = vshrl.u32 %v1693, 7
          %v1695 = vsub.s32 0, %v1694
          %v1696 = vrot.slane %v1691, %v1695
          %1698 = vmatprep.subr.mxu0 0.0
          %1699 = vmatpush1.msra.mxu0 %v1659
          %1700 = vmatprep.subr.mxu0 0.0
          %1701 = vmatpush1.msra.mxu0 %v1660
          %1702 = vmatprep.subr.mxu0 0.0
          %1703 = vmatpush1.msra.mxu0 %v1661
          %1704 = vmatprep.subr.mxu0 0.0
          %1705 = vmatpush1.msra.mxu0 %v1662
          %1706 = vmatprep.subr.mxu0 0.0
          %1707 = vmatpush1.msra.mxu0 %v1663
          %1708 = vmatprep.subr.mxu0 0.0
          %1709 = vmatpush1.msra.mxu0 %v1664
          %1710 = vmatprep.subr.mxu0 0.0
          %1711 = vmatpush1.msra.mxu0 %v1665
          %1712 = vmatprep.subr.mxu0 0.0
          %1713 = vmatpush1.msra.mxu0 %v1666
          %1714 = vmatprep.subr.mxu0 0.0
          %1715 = vmatpush1.msra.mxu0 %v1667
          %1716 = vmatprep.subr.mxu0 0.0
          %1717 = vmatpush1.msra.mxu0 %v1668
          %1718 = vmatprep.subr.mxu0 0.0
          %1719 = vmatpush1.msra.mxu0 %v1669
          %1720 = vmatprep.subr.mxu0 0.0
          %1721 = vmatpush1.msra.mxu0 %v1670
          %1722 = vmatprep.subr.mxu0 0.0
          %1723 = vmatpush1.msra.mxu0 %v1671
          %1724 = vmatprep.subr.mxu0 0.0
          %1725 = vmatpush1.msra.mxu0 %v1672
          %1726 = vmatprep.subr.mxu0 0.0
          %1727 = vmatpush1.msra.mxu0 %v1673
          %1728 = vmatprep.subr.mxu0 0.0
          %1729 = vmatpush1.msra.mxu0 %v1674
          %1730 = vmatprep.subr.mxu0 0.0
          %1731 = vmatpush1.msra.mxu0 %v1675
          %1732 = vmatprep.subr.mxu0 0.0
          %1733 = vmatpush1.msra.mxu0 %v1676
          %1734 = vmatprep.subr.mxu0 0.0
          %1735 = vmatpush1.msra.mxu0 %v1677
          %1736 = vmatprep.subr.mxu0 0.0
          %1737 = vmatpush1.msra.mxu0 %v1678
          %1738 = vmatprep.subr.mxu0 0.0
          %1739 = vmatpush1.msra.mxu0 %v1679
          %1740 = vmatprep.subr.mxu0 0.0
          %1741 = vmatpush1.msra.mxu0 %v1680
          %1742 = vmatprep.subr.mxu0 0.0
          %1743 = vmatpush1.msra.mxu0 %v1681
          %1744 = vmatprep.subr.mxu0 0.0
          %1745 = vmatpush1.msra.mxu0 %v1682
          %1746 = vmatprep.subr.mxu0 0.0
          %1747 = vmatpush1.msra.mxu0 %v1683
          %1748 = vmatprep.subr.mxu0 0.0
          %1749 = vmatpush1.msra.mxu0 %v1684
          %1750 = vmatprep.subr.mxu0 0.0
          %1751 = vmatpush1.msra.mxu0 %v1685
          %1752 = vmatprep.subr.mxu0 0.0
          %1753 = vmatpush1.msra.mxu0 %v1686
          %1754 = vmatprep.subr.mxu0 0.0
          %1755 = vmatpush1.msra.mxu0 %v1687
          %1756 = vmatprep.subr.mxu0 0.0
          %1757 = vmatpush1.msra.mxu0 %v1688
          %1758 = vmatprep.subr.mxu0 0.0
          %1759 = vmatpush1.msra.mxu0 %v1689
          %1760 = vmatprep.subr.mxu0 0.0
          %1761 = vmatpush1.msra.mxu0 %v1690
          %1762 = vmatprep.mubr.f32.mxu0 %v1656
          %1763 = vmatmul.mubr.f32.gmra.mrb[0].mxu0 %v1655
          %v1764 = vpop.f32.mrb[0].mxu0
          %v1765 = vadd.f32 %v1696, %v1764
          %v1766 = vpop.f32.mrb[0].mxu0
          %1767 = vmatprep.mubr.f32.mxu0 %v1658
          %1768 = vmatmul.mubr.f32.gmra.mrb[0].mxu0 %v1657
          %v1769 = vpop.f32.mrb[0].mxu0
          %v1770 = vadd.f32 %v1696, %v1769
          %v1771 = vpop.f32.mrb[0].mxu0
          %1772 = vdwg.mxu0
          %v1773 = vmax.f32 %v1765, 0.0
          %v1774 = vmax.f32 %v1770, 0.0
          %v1775 = vld [vmem:[%s8] sm:$0x1]
          %v1777 = vlaneseq
          %v1778 = vshrl.u32 %v1777, 7
          %v1779 = vsub.s32 0, %v1778
          %v1780 = vrot.slane %v1775, %v1779
          %v1782 = vmul.f32 %v1773, %v1780
          %v1783 = vmul.f32 %v1774, %v1780
          %1784 = vadd.xlane.f32.xlu0 %v1782
          %v1785 = vpop.xlane.xlu0 %1784
          %1786 = vadd.xlane.f32.xlu0 %v1783
          %v1787 = vpop.xlane.xlu0 %1786
          %v1788 = vld [vmem:[#allocation3] sm:$0x1]
          %v1790 = vlaneseq
          %v1791 = vshrl.u32 %v1790, 7
          %v1792 = vsub.s32 0, %v1791
          %v1793 = vrot.slane %v1788, %v1792
          %v1795 = vadd.f32 %v1785, %v1793
          %v1796 = vadd.f32 %v1787, %v1793
          %1798 = vset.pattern.permute.xlu0 0
          %1799 = vperm.xlu0 %1798, %v1795
          %v1800 = vpop.permute.xlu0 %1799
          %1803 = vset.pattern.permute.xlu0 0
          %1804 = vperm.xlu0 %1803, %v1796
          %v1805 = vpop.permute.xlu0 %1804
          %1807 = vst [vmem:[%s431] sm:$0xff] %v1800
          %1808 = vst [vmem:[%s431 + $0x8] sm:$0xff] %v1805
        $region91: #{combined_transfer_forward.1} parent=78 // pred_fallthru
          _
        %s1809 = smul.u32 2, %s27
        %p1810 = scmp.lt.s32.totalorder %s1809, 1
        %s1811 = scalar_select %p1810, %s1809, 1
        %s1812 = smul.addr %s1811, 8
        %s1813 = scalar_lea.vmem %s10, %s1812
        // Predicated region
        $region92: #{combined_transfer_forward.1} parent=78 // pred_check
          %p1814 = pneg %p275
        $region93: #{combined_transfer_forward.1} parent=78 // pred_check_branch
          %1816 = sbr.rel (%p1814) target = $region95
        $region94: #{combined_transfer_forward.1} parent=78 // pred_region
          %s1817 = smul.u32 2, %s27
        $region95: #{combined_transfer_forward.1} parent=78 // pred_fallthru
          _
        // Predicated region
        $region96: #{combined_transfer_forward.1} parent=78 // pred_check
          %p1818 = pneg %p275
        $region97: #{combined_transfer_forward.1} parent=78 // pred_check_branch
          %1820 = sbr.rel (%p1818) target = $region99
        $region98: #{combined_transfer_forward.1} parent=78 // pred_region
          %s1821 = smul.u32 2, %s27
          %p1822 = scmp.lt.s32.totalorder %s1821, 1
          %s1823 = scalar_select %p1822, %s1821, 1
          %s1824 = smul.addr %s1823, 8
          %s1825 = scalar_lea.vmem %s10, %s1824
        $region99: #{combined_transfer_forward.1} parent=78 // pred_fallthru
          _
      $region79: #{combined_transfer_forward.1} parent=5 // pred_fallthru
        _
      %p1826 = scmp.le.s32.totalorder 2, %s18
      // Predicated region
      $region100: #{combined_transfer_forward.1} parent=5 // pred_check
        %p1827 = pneg %p1826
      $region101: #{combined_transfer_forward.1} parent=5 // pred_check_branch
        %1829 = sbr.rel (%p1827) target = $region103
      $region102: #{combined_transfer_forward.1} parent=5 // pred_region
        %s1830 = ssub.s32 %s18, 2
      $region103: #{combined_transfer_forward.1} parent=5 // pred_fallthru
        _
    $region6: #{combined_transfer_forward.1} parent=1 // loop_footer
      %s22 = sadd.s32 1, %s18
    $region7: #{combined_transfer_forward.1} parent=1 // loop_footer_branch
      %17 = sbr.rel target = $region3
    $region8: #{combined_transfer_forward.1} parent=1 // loop_exit
      _

</llo_original>
